<compile_context>
chip_gen: v5e
topology: v5e:2x2
jax: 0.10.0
libtpu: 0.0.40
codegen_flags: <defaults>
</compile_context>

<pallas_src>
import numpy as np
import jax
import jax.numpy as jnp
from jax import lax
from jax.experimental import pallas as pl
from jax.experimental.pallas import tpu as pltpu

IMG = 96    # dummy-input spatial size (fixed by the module)
MID = 48    # after first avg-pool
LAT = 24    # after second avg-pool (latent spatial size)
K = 5       # conv kernel size
LANE = 128  # per-channel lane padding of the output slab (3 channels -> 384 lanes)


# ---------------------------------------------------------------------------
# Host-side constant structural matrices (weight independent, built once).
# ---------------------------------------------------------------------------
def _np_shift(n, s):
    # S_s[a, c] = 1 iff c == a + s   (0/1 shift matrix; rows falling off the edge are 0)
    a = np.arange(n)[:, None]
    c = np.arange(n)[None, :]
    return (c == a + s).astype(np.float32)


def _np_pool_R(n_in, n_out):
    # R[i, o] = 1 iff input row i lies in the 3-wide window of output o (pad=1, stride=2)
    i = np.arange(n_in)[:, None]
    o = np.arange(n_out)[None, :]
    return (np.abs(i - 2 * o) <= 1).astype(np.float32)


_R48 = _np_pool_R(MID, LAT)                                                  # (48, 24)
_R96 = _np_pool_R(IMG, MID)                                                  # (96, 48)
_R48T = np.ascontiguousarray(_R48.T)                                         # (24, 48)
_R96T = np.ascontiguousarray(_R96.T)                                         # (48, 96)
# (1/9) * vstack_u(S_{2-u}) @ R  : avg-pool backward fused with the conv row shifts.
_SV48 = np.concatenate([_np_shift(MID, 2 - u) for u in range(K)], axis=0)    # (240, 48)
_SV96 = np.concatenate([_np_shift(IMG, 2 - u) for u in range(K)], axis=0)    # (480, 96)
_SR48 = (_SV48 @ _R48) / 9.0                                                 # (240, 24)
_SR96 = (_SV96 @ _R96) / 9.0                                                 # (480, 48)
# column-shift stacks, used host-side only to fold conv weights into banded matrices:
_SHIFT48 = np.stack([_np_shift(MID, v - 2) for v in range(K)])               # (5, 48, 48)
_SHIFT96 = np.stack([_np_shift(IMG, v - 2) for v in range(K)])               # (5, 96, 96)


# ---------------------------------------------------------------------------
# Pallas kernel: the whole backward chain + where() + nonzero count.
# ---------------------------------------------------------------------------
def _attn_vis_kernel(mask_ref, r48t_ref, sr48_ref, b2_ref, r96t_ref, sr96_ref,
                     b1_ref, img_ref,
                     att_ref, grad_ref, nsel_ref,
                     p2_ref, p1_ref):
    f32 = jnp.float32

    def mm(a, b):
        return jnp.dot(a, b, preferred_element_type=f32)

    # dL/d(conv2 out) row-shifted for all 5 kernel rows, pool2-backward folded in:
    #   P2[u*48+a, :] = (S_{2-u} @ (1/9) R48 @ mask @ R48^T)[a, :]
    t2 = mm(mask_ref[...], r48t_ref[...])                     # (24, 48)
    p2_ref[...] = mm(sr48_ref[...], t2)                       # (240, 48)

    # conv2 backward: column shifts + weights folded into banded B2.
    g_p1 = jnp.zeros((MID, MID), f32)                         # dL/d(pool1 out)
    for u in range(K):
        g_p1 = g_p1 + mm(p2_ref[pl.ds(u * MID, MID), :],
                         b2_ref[pl.ds(u * MID, MID), :])

    # dL/d(conv1 out) row-shifted, pool1-backward folded in (shared by all 3 channels).
    t1 = mm(g_p1, r96t_ref[...])                              # (48, 96)
    p1_ref[...] = mm(sr96_ref[...], t1)                       # (480, 96)

    # conv1 backward for ALL 3 input channels at once (channels packed along lanes).
    g_slab = jnp.zeros((IMG, 3 * LANE), f32)                  # dL/d(dummy), (96, 384)
    for u in range(K):
        g_slab = g_slab + mm(p1_ref[pl.ds(u * IMG, IMG), :],
                             b1_ref[pl.ds(u * IMG, IMG), :])

    grad_ref[...] = g_slab
    nz = g_slab != 0.0                                        # padding lanes are exact 0
    att_ref[...] = jnp.where(nz, img_ref[...], 1.0)
    nsel_ref[0, 0] = jnp.sum(nz.astype(f32))


# ---------------------------------------------------------------------------
# Jitted wrapper: fold weights into banded matrices, call kernel, unpack slabs.
# ---------------------------------------------------------------------------
@jax.jit
def _attn_vis_impl(input_image, latent_mask, conv1_w, conv2_w):
    mask2d = latent_mask.reshape(LAT, LAT).astype(jnp.float32)

    # B2_u = sum_v w2[u,v] * S48_{v-2}, vstacked over u.
    w2 = conv2_w.reshape(K, K).astype(jnp.float32)
    b2 = jnp.einsum('uv,vab->uab', w2, _SHIFT48).reshape(K * MID, MID)          # (240, 48)

    # B1_u^{(c)} = sum_v w1[c,u,v] * S96_{v-2}; channel c padded to 128 lanes and packed.
    w1 = conv1_w.reshape(3, K, K).astype(jnp.float32)
    b1 = jnp.einsum('cuv,vab->ucab', w1, _SHIFT96)                              # (5,3,96,96)
    b1 = jnp.pad(b1, ((0, 0), (0, 0), (0, 0), (0, LANE - IMG)))                 # (5,3,96,128)
    b1 = b1.transpose(0, 2, 1, 3).reshape(K * IMG, 3 * LANE)                    # (480, 384)

    # Pack the input image into the same lane-dense (96, 3*128) slab layout.
    img = input_image[0].astype(jnp.float32)                                    # (3, 96, 96)
    img_slab = jnp.pad(img.transpose(1, 0, 2),
                       ((0, 0), (0, 0), (0, LANE - IMG))).reshape(IMG, 3 * LANE)

    vmem = pl.BlockSpec(memory_space=pltpu.MemorySpace.VMEM)
    smem = pl.BlockSpec(memory_space=pltpu.MemorySpace.SMEM)

    att_slab, grad_slab, nsel = pl.pallas_call(
        _attn_vis_kernel,
        out_shape=(jax.ShapeDtypeStruct((IMG, 3 * LANE), jnp.float32),   # attended slab
                   jax.ShapeDtypeStruct((IMG, 3 * LANE), jnp.float32),   # grad slab
                   jax.ShapeDtypeStruct((1, 1), jnp.float32)),           # nonzero-grad count
        in_specs=[vmem] * 8,
        out_specs=(vmem, vmem, smem),
        scratch_shapes=[pltpu.VMEM((K * MID, MID), jnp.float32),         # P2 (240, 48)
                        pltpu.VMEM((K * IMG, IMG), jnp.float32)],        # P1 (480, 96)
    )(mask2d, _R48T, _SR48, b2, _R96T, _SR96, b1, img_slab)

    # Un-pack the lane-dense slabs back to NCHW.
    att = att_slab.reshape(IMG, 3, LANE)[:, :, :IMG].transpose(1, 0, 2)[None]
    grad = grad_slab.reshape(IMG, 3, LANE)[:, :, :IMG].transpose(1, 0, 2)[None]
    return att, grad, nsel[0, 0], jnp.sum(latent_mask)


def attention_visualizer(input_image, latent_mask, conv1_w, conv2_w):
    """input_image: (1,3,96,96) f32 NCHW, latent_mask: (576,) f32.
    Returns (attended_image (1,3,96,96), grad_wrt_dummy (1,3,96,96))."""
    att, grad, nsel, mask_sum = _attn_vis_impl(input_image, latent_mask, conv1_w, conv2_w)
    # Host-side prints (same statistics the PyTorch module prints).
    print('Number of latent spatial locations selected for attention: {}.'.format(
        float(mask_sum)))
    print('Percentage of input image pixels attended to: {:.1f}%.\n'.format(
        float(nsel) / (3 * IMG * IMG) * 100))
    return att, grad


if __name__ == "__main__":
    key = jax.random.PRNGKey(0)
    k1, k2, k3, k4 = jax.random.split(key, 4)

    # Deterministic parameters (shapes from the module's __init__).
    # Conv biases are omitted: they do not affect d(loss)/d(dummy_input) nor the output.
    conv1_w = 0.1 * jax.random.normal(k1, (1, 3, K, K), jnp.float32)   # Conv2d(3,1,5,pad=2)
    conv2_w = 0.1 * jax.random.normal(k2, (1, 1, K, K), jnp.float32)   # Conv2d(1,1,5,pad=2)

    input_image = jax.random.uniform(k3, (1, 3, IMG, IMG), jnp.float32)
    latent_mask = (jax.random.uniform(k4, (LAT * LAT,)) < 0.08).astype(jnp.float32)

    attended, grad = attention_visualizer(input_image, latent_mask, conv1_w, conv2_w)
    attended = jax.block_until_ready(attended)

    # Cross-check the in-kernel backward chain against plain-JAX autodiff.
    def _ref_loss(dummy):
        def pool(x):
            s = lax.reduce_window(x, 0.0, lax.add, (1, 1, 3, 3), (1, 1, 2, 2),
                                  [(0, 0), (0, 0), (1, 1), (1, 1)])
            return s / 9.0
        y1 = lax.conv_general_dilated(dummy, conv1_w, (1, 1), [(2, 2), (2, 2)],
                                      dimension_numbers=('NCHW', 'OIHW', 'NCHW'))
        y2 = lax.conv_general_dilated(pool(y1), conv2_w, (1, 1), [(2, 2), (2, 2)],
                                      dimension_numbers=('NCHW', 'OIHW', 'NCHW'))
        return jnp.sum(pool(y2).reshape(-1) * latent_mask)

    ref_grad = jax.grad(_ref_loss)(jnp.ones((1, 3, IMG, IMG), jnp.float32))
    np.testing.assert_allclose(np.asarray(grad), np.asarray(ref_grad), rtol=5e-2, atol=1e-3)
    ref_attended = jnp.where(ref_grad != 0, input_image, jnp.ones_like(input_image))
    np.testing.assert_allclose(np.asarray(attended), np.asarray(ref_attended),
                               rtol=5e-2, atol=1e-3)

    print("KERNEL_OK")
</pallas_src>

<mosaic_0001>
module attributes {stable_mosaic.version = 11 : i64} {
  func.func @_attn_vis_kernel(%arg0: memref<24x24xf32, #tpu.memory_space<vmem>>, %arg1: memref<24x48xf32, #tpu.memory_space<vmem>>, %arg2: memref<240x24xf32, #tpu.memory_space<vmem>>, %arg3: memref<240x48xf32, #tpu.memory_space<vmem>>, %arg4: memref<48x96xf32, #tpu.memory_space<vmem>>, %arg5: memref<480x48xf32, #tpu.memory_space<vmem>>, %arg6: memref<480x384xf32, #tpu.memory_space<vmem>>, %arg7: memref<96x384xf32, #tpu.memory_space<vmem>>, %arg8: memref<96x384xf32, #tpu.memory_space<vmem>>, %arg9: memref<96x384xf32, #tpu.memory_space<vmem>>, %arg10: memref<1x1xf32, #tpu.memory_space<smem>>, %arg11: memref<240x48xf32, #tpu.memory_space<vmem>>, %arg12: memref<480x96xf32, #tpu.memory_space<vmem>>) attributes {dimension_semantics = [], scalar_prefetch = 0 : i64, scratch_operands = 2 : i64, tpu.core_type = #tpu.core_type<tc>} {
    %c0 = arith.constant 0 : index
    %c0_0 = arith.constant 0 : index
    %0 = vector.load %arg0[%c0, %c0_0] : memref<24x24xf32, #tpu.memory_space<vmem>>, vector<24x24xf32>
    %c0_1 = arith.constant 0 : index
    %c0_2 = arith.constant 0 : index
    %1 = vector.load %arg1[%c0_1, %c0_2] : memref<24x48xf32, #tpu.memory_space<vmem>>, vector<24x48xf32>
    %cst = arith.constant dense<0.000000e+00> : vector<24x48xf32>
    %2 = tpu.matmul %0, %1, %cst {dimension_numbers = #tpu.dot_dimension_numbers<[1], [0], [0], [1], [0, 0, 1, 1], [], []>} : vector<24x24xf32>, vector<24x48xf32>, vector<24x48xf32> -> vector<24x48xf32>
    %c0_3 = arith.constant 0 : index
    %c0_4 = arith.constant 0 : index
    %3 = vector.load %arg2[%c0_3, %c0_4] : memref<240x24xf32, #tpu.memory_space<vmem>>, vector<240x24xf32>
    %cst_5 = arith.constant dense<0.000000e+00> : vector<240x48xf32>
    %4 = tpu.matmul %3, %2, %cst_5 {dimension_numbers = #tpu.dot_dimension_numbers<[1], [0], [0], [1], [0, 0, 1, 1], [], []>} : vector<240x24xf32>, vector<24x48xf32>, vector<240x48xf32> -> vector<240x48xf32>
    %c0_6 = arith.constant 0 : index
    %c0_7 = arith.constant 0 : index
    %5 = vector.load %arg11[%c0_6, %c0_7] : memref<240x48xf32, #tpu.memory_space<vmem>>, vector<240x48xf32>
    tpu.vector_store %arg11[%c0_6, %c0_7], %4 {strides = array<i32>} : memref<240x48xf32, #tpu.memory_space<vmem>>, vector<240x48xf32>,
    %cst_8 = arith.constant 0.000000e+00 : f32
    %6 = vector.broadcast %cst_8 : f32 to vector<48x48xf32>
    %c0_9 = arith.constant 0 : index
    %c0_10 = arith.constant 0 : index
    %7 = vector.load %arg11[%c0_9, %c0_10] : memref<240x48xf32, #tpu.memory_space<vmem>>, vector<48x48xf32>
    %c0_11 = arith.constant 0 : index
    %c0_12 = arith.constant 0 : index
    %8 = vector.load %arg3[%c0_11, %c0_12] : memref<240x48xf32, #tpu.memory_space<vmem>>, vector<48x48xf32>
    %cst_13 = arith.constant dense<0.000000e+00> : vector<48x48xf32>
    %9 = tpu.matmul %7, %8, %cst_13 {dimension_numbers = #tpu.dot_dimension_numbers<[1], [0], [0], [1], [0, 0, 1, 1], [], []>} : vector<48x48xf32>, vector<48x48xf32>, vector<48x48xf32> -> vector<48x48xf32>
    %10 = arith.addf %6, %9 : vector<48x48xf32>
    %c48 = arith.constant 48 : index
    %c0_14 = arith.constant 0 : index
    %11 = vector.load %arg11[%c48, %c0_14] : memref<240x48xf32, #tpu.memory_space<vmem>>, vector<48x48xf32>
    %c48_15 = arith.constant 48 : index
    %c0_16 = arith.constant 0 : index
    %12 = vector.load %arg3[%c48_15, %c0_16] : memref<240x48xf32, #tpu.memory_space<vmem>>, vector<48x48xf32>
    %cst_17 = arith.constant dense<0.000000e+00> : vector<48x48xf32>
    %13 = tpu.matmul %11, %12, %cst_17 {dimension_numbers = #tpu.dot_dimension_numbers<[1], [0], [0], [1], [0, 0, 1, 1], [], []>} : vector<48x48xf32>, vector<48x48xf32>, vector<48x48xf32> -> vector<48x48xf32>
    %14 = arith.addf %10, %13 : vector<48x48xf32>
    %c96 = arith.constant 96 : index
    %c0_18 = arith.constant 0 : index
    %15 = vector.load %arg11[%c96, %c0_18] : memref<240x48xf32, #tpu.memory_space<vmem>>, vector<48x48xf32>
    %c96_19 = arith.constant 96 : index
    %c0_20 = arith.constant 0 : index
    %16 = vector.load %arg3[%c96_19, %c0_20] : memref<240x48xf32, #tpu.memory_space<vmem>>, vector<48x48xf32>
    %cst_21 = arith.constant dense<0.000000e+00> : vector<48x48xf32>
    %17 = tpu.matmul %15, %16, %cst_21 {dimension_numbers = #tpu.dot_dimension_numbers<[1], [0], [0], [1], [0, 0, 1, 1], [], []>} : vector<48x48xf32>, vector<48x48xf32>, vector<48x48xf32> -> vector<48x48xf32>
    %18 = arith.addf %14, %17 : vector<48x48xf32>
    %c144 = arith.constant 144 : index
    %c0_22 = arith.constant 0 : index
    %19 = vector.load %arg11[%c144, %c0_22] : memref<240x48xf32, #tpu.memory_space<vmem>>, vector<48x48xf32>
    %c144_23 = arith.constant 144 : index
    %c0_24 = arith.constant 0 : index
    %20 = vector.load %arg3[%c144_23, %c0_24] : memref<240x48xf32, #tpu.memory_space<vmem>>, vector<48x48xf32>
    %cst_25 = arith.constant dense<0.000000e+00> : vector<48x48xf32>
    %21 = tpu.matmul %19, %20, %cst_25 {dimension_numbers = #tpu.dot_dimension_numbers<[1], [0], [0], [1], [0, 0, 1, 1], [], []>} : vector<48x48xf32>, vector<48x48xf32>, vector<48x48xf32> -> vector<48x48xf32>
    %22 = arith.addf %18, %21 : vector<48x48xf32>
    %c192 = arith.constant 192 : index
    %c0_26 = arith.constant 0 : index
    %23 = vector.load %arg11[%c192, %c0_26] : memref<240x48xf32, #tpu.memory_space<vmem>>, vector<48x48xf32>
    %c192_27 = arith.constant 192 : index
    %c0_28 = arith.constant 0 : index
    %24 = vector.load %arg3[%c192_27, %c0_28] : memref<240x48xf32, #tpu.memory_space<vmem>>, vector<48x48xf32>
    %cst_29 = arith.constant dense<0.000000e+00> : vector<48x48xf32>
    %25 = tpu.matmul %23, %24, %cst_29 {dimension_numbers = #tpu.dot_dimension_numbers<[1], [0], [0], [1], [0, 0, 1, 1], [], []>} : vector<48x48xf32>, vector<48x48xf32>, vector<48x48xf32> -> vector<48x48xf32>
    %26 = arith.addf %22, %25 : vector<48x48xf32>
    %c0_30 = arith.constant 0 : index
    %c0_31 = arith.constant 0 : index
    %27 = vector.load %arg4[%c0_30, %c0_31] : memref<48x96xf32, #tpu.memory_space<vmem>>, vector<48x96xf32>
    %cst_32 = arith.constant dense<0.000000e+00> : vector<48x96xf32>
    %28 = tpu.matmul %26, %27, %cst_32 {dimension_numbers = #tpu.dot_dimension_numbers<[1], [0], [0], [1], [0, 0, 1, 1], [], []>} : vector<48x48xf32>, vector<48x96xf32>, vector<48x96xf32> -> vector<48x96xf32>
    %c0_33 = arith.constant 0 : index
    %c0_34 = arith.constant 0 : index
    %29 = vector.load %arg5[%c0_33, %c0_34] : memref<480x48xf32, #tpu.memory_space<vmem>>, vector<480x48xf32>
    %cst_35 = arith.constant dense<0.000000e+00> : vector<480x96xf32>
    %30 = tpu.matmul %29, %28, %cst_35 {dimension_numbers = #tpu.dot_dimension_numbers<[1], [0], [0], [1], [0, 0, 1, 1], [], []>} : vector<480x48xf32>, vector<48x96xf32>, vector<480x96xf32> -> vector<480x96xf32>
    %c0_36 = arith.constant 0 : index
    %c0_37 = arith.constant 0 : index
    %31 = vector.load %arg12[%c0_36, %c0_37] : memref<480x96xf32, #tpu.memory_space<vmem>>, vector<480x96xf32>
    tpu.vector_store %arg12[%c0_36, %c0_37], %30 {strides = array<i32>} : memref<480x96xf32, #tpu.memory_space<vmem>>, vector<480x96xf32>,
    %cst_38 = arith.constant 0.000000e+00 : f32
    %32 = vector.broadcast %cst_38 : f32 to vector<96x384xf32>
    %c0_39 = arith.constant 0 : index
    %c0_40 = arith.constant 0 : index
    %33 = vector.load %arg12[%c0_39, %c0_40] : memref<480x96xf32, #tpu.memory_space<vmem>>, vector<96x96xf32>
    %c0_41 = arith.constant 0 : index
    %c0_42 = arith.constant 0 : index
    %34 = vector.load %arg6[%c0_41, %c0_42] : memref<480x384xf32, #tpu.memory_space<vmem>>, vector<96x384xf32>
    %cst_43 = arith.constant dense<0.000000e+00> : vector<96x384xf32>
    %35 = tpu.matmul %33, %34, %cst_43 {dimension_numbers = #tpu.dot_dimension_numbers<[1], [0], [0], [1], [0, 0, 1, 1], [], []>} : vector<96x96xf32>, vector<96x384xf32>, vector<96x384xf32> -> vector<96x384xf32>
    %36 = arith.addf %32, %35 : vector<96x384xf32>
    %c96_44 = arith.constant 96 : index
    %c0_45 = arith.constant 0 : index
    %37 = vector.load %arg12[%c96_44, %c0_45] : memref<480x96xf32, #tpu.memory_space<vmem>>, vector<96x96xf32>
    %c96_46 = arith.constant 96 : index
    %c0_47 = arith.constant 0 : index
    %38 = vector.load %arg6[%c96_46, %c0_47] : memref<480x384xf32, #tpu.memory_space<vmem>>, vector<96x384xf32>
    %cst_48 = arith.constant dense<0.000000e+00> : vector<96x384xf32>
    %39 = tpu.matmul %37, %38, %cst_48 {dimension_numbers = #tpu.dot_dimension_numbers<[1], [0], [0], [1], [0, 0, 1, 1], [], []>} : vector<96x96xf32>, vector<96x384xf32>, vector<96x384xf32> -> vector<96x384xf32>
    %40 = arith.addf %36, %39 : vector<96x384xf32>
    %c192_49 = arith.constant 192 : index
    %c0_50 = arith.constant 0 : index
    %41 = vector.load %arg12[%c192_49, %c0_50] : memref<480x96xf32, #tpu.memory_space<vmem>>, vector<96x96xf32>
    %c192_51 = arith.constant 192 : index
    %c0_52 = arith.constant 0 : index
    %42 = vector.load %arg6[%c192_51, %c0_52] : memref<480x384xf32, #tpu.memory_space<vmem>>, vector<96x384xf32>
    %cst_53 = arith.constant dense<0.000000e+00> : vector<96x384xf32>
    %43 = tpu.matmul %41, %42, %cst_53 {dimension_numbers = #tpu.dot_dimension_numbers<[1], [0], [0], [1], [0, 0, 1, 1], [], []>} : vector<96x96xf32>, vector<96x384xf32>, vector<96x384xf32> -> vector<96x384xf32>
    %44 = arith.addf %40, %43 : vector<96x384xf32>
    %c288 = arith.constant 288 : index
    %c0_54 = arith.constant 0 : index
    %45 = vector.load %arg12[%c288, %c0_54] : memref<480x96xf32, #tpu.memory_space<vmem>>, vector<96x96xf32>
    %c288_55 = arith.constant 288 : index
    %c0_56 = arith.constant 0 : index
    %46 = vector.load %arg6[%c288_55, %c0_56] : memref<480x384xf32, #tpu.memory_space<vmem>>, vector<96x384xf32>
    %cst_57 = arith.constant dense<0.000000e+00> : vector<96x384xf32>
    %47 = tpu.matmul %45, %46, %cst_57 {dimension_numbers = #tpu.dot_dimension_numbers<[1], [0], [0], [1], [0, 0, 1, 1], [], []>} : vector<96x96xf32>, vector<96x384xf32>, vector<96x384xf32> -> vector<96x384xf32>
    %48 = arith.addf %44, %47 : vector<96x384xf32>
    %c384 = arith.constant 384 : index
    %c0_58 = arith.constant 0 : index
    %49 = vector.load %arg12[%c384, %c0_58] : memref<480x96xf32, #tpu.memory_space<vmem>>, vector<96x96xf32>
    %c384_59 = arith.constant 384 : index
    %c0_60 = arith.constant 0 : index
    %50 = vector.load %arg6[%c384_59, %c0_60] : memref<480x384xf32, #tpu.memory_space<vmem>>, vector<96x384xf32>
    %cst_61 = arith.constant dense<0.000000e+00> : vector<96x384xf32>
    %51 = tpu.matmul %49, %50, %cst_61 {dimension_numbers = #tpu.dot_dimension_numbers<[1], [0], [0], [1], [0, 0, 1, 1], [], []>} : vector<96x96xf32>, vector<96x384xf32>, vector<96x384xf32> -> vector<96x384xf32>
    %52 = arith.addf %48, %51 : vector<96x384xf32>
    %c0_62 = arith.constant 0 : index
    %c0_63 = arith.constant 0 : index
    %53 = vector.load %arg9[%c0_62, %c0_63] : memref<96x384xf32, #tpu.memory_space<vmem>>, vector<96x384xf32>
    tpu.vector_store %arg9[%c0_62, %c0_63], %52 {strides = array<i32>} : memref<96x384xf32, #tpu.memory_space<vmem>>, vector<96x384xf32>,
    %cst_64 = arith.constant 0.000000e+00 : f32
    %54 = vector.broadcast %cst_64 : f32 to vector<96x384xf32>
    %55 = arith.cmpf one, %52, %54 : vector<96x384xf32>
    %c0_65 = arith.constant 0 : index
    %c0_66 = arith.constant 0 : index
    %56 = vector.load %arg7[%c0_65, %c0_66] : memref<96x384xf32, #tpu.memory_space<vmem>>, vector<96x384xf32>
    %cst_67 = arith.constant 1.000000e+00 : f32
    %57 = vector.broadcast %cst_67 : f32 to vector<96x384xf32>
    %58 = arith.select %55, %56, %57 : vector<96x384xi1>, vector<96x384xf32>
    %c0_68 = arith.constant 0 : index
    %c0_69 = arith.constant 0 : index
    %59 = vector.load %arg8[%c0_68, %c0_69] : memref<96x384xf32, #tpu.memory_space<vmem>>, vector<96x384xf32>
    tpu.vector_store %arg8[%c0_68, %c0_69], %58 {strides = array<i32>} : memref<96x384xf32, #tpu.memory_space<vmem>>, vector<96x384xf32>,
    %60 = arith.extui %55 : vector<96x384xi1> to vector<96x384xi32>
    %61 = arith.sitofp %60 : vector<96x384xi32> to vector<96x384xf32>
    %62 = vector.shape_cast %61 : vector<96x384xf32> to vector<1x96x384xf32>
    %cst_70 = arith.constant dense<0.000000e+00> : vector<1xf32>
    %63 = vector.multi_reduction <add>, %62, %cst_70 [1, 2] : vector<1x96x384xf32> to vector<1xf32>
    %64 = vector.shape_cast %63 : vector<1xf32> to vector<1x1x1xf32>
    %65 = vector.extract %64[0, 0, 0] : f32 from vector<1x1x1xf32>
    %c0_71 = arith.constant 0 : index
    %c0_72 = arith.constant 0 : index
    %66 = memref.load %arg10[%c0_71, %c0_72] : memref<1x1xf32, #tpu.memory_space<smem>>
    memref.store %65, %arg10[%c0_71, %c0_72] : memref<1x1xf32, #tpu.memory_space<smem>>
    return
  }
}

</mosaic_0001>

<llo_original>
// kernel: _attn_vis_impl.1
$region0: #{_attn_vis_impl.1}
  #allocation0 [shape = 'u32[]', space=smem, size = 0x4, offset = 0x4, fixed_abs, tag = 'smem constant byte address 0x4 - core index']
  #allocation1 [shape = 'u32[72,128]{1,0:T(1,128)}', space=vmem, size = 0x9000, scoped, tag = 'internal scratch']
  #allocation2 [shape = 'f32[240,48]{1,0:T(8,128)}', space=vmem, size = 0x1e000, scoped, tag = 'scratch operand']
  #allocation3 [shape = 'f32[480,96]{1,0:T(8,128)}', space=vmem, size = 0x3c000, scoped, tag = 'scratch operand']
  %s0 = inlined_call_operand.vmem [shape: f32[24,24], index: 0, kind: input, shape index: {}]
  %s1 = inlined_call_operand.vmem [shape: f32[24,48], index: 1, kind: input, shape index: {}]
  %s2 = inlined_call_operand.vmem [shape: f32[240,24], index: 2, kind: input, shape index: {}]
  %s3 = inlined_call_operand.vmem [shape: f32[240,48], index: 3, kind: input, shape index: {}]
  %s4 = inlined_call_operand.vmem [shape: f32[48,96], index: 4, kind: input, shape index: {}]
  %s5 = inlined_call_operand.vmem [shape: f32[480,48], index: 5, kind: input, shape index: {}]
  %s6 = inlined_call_operand.vmem [shape: f32[480,384], index: 6, kind: input, shape index: {}]
  %s7 = inlined_call_operand.vmem [shape: f32[96,384], index: 7, kind: input, shape index: {}]
  %s8 = inlined_call_operand.vmem [shape: f32[96,384], index: 8, kind: output, shape index: {0}]
  %s9 = inlined_call_operand.vmem [shape: f32[96,384], index: 9, kind: output, shape index: {1}]
  %s10 = inlined_call_operand.hbm [shape: f32[1,1], index: 10, kind: output, shape index: {2}]
  %11 = xla_tuple %s8, %s9, %s10
  %s12 = sld [smem:[#allocation0]]
  $region58: #{_attn_vis_impl.1} parent=0
    _
  %s14 = ssub.s32 1, %s12
  %s15 = scalar_select 0, %s14, %s12
  $region1: #{_attn_vis_impl.1} parent=0
    #allocation4 [shape = 'u8[512]{0}', space=smem, size = 0x200, scoped, tag = 'output window, operand 2, single buffered']
    #allocation5 [shape = 's32[1]{0}', space=sflag, size = 0x4, scoped, tag = 'scoped memory for _attn_vis_impl.1']
    %16 = vsyncpa [#allocation5], 0
    // Predicated region
    $region2: #{_attn_vis_impl.1} parent=1 // pred_check
      _
    $region3: #{_attn_vis_impl.1} parent=1 // pred_check_branch
      %18 = sbr.rel (0) target = $region5
    $region4: #{_attn_vis_impl.1} parent=1 // pred_region
      _
    $region5: #{_attn_vis_impl.1} parent=1 // pred_fallthru
      _
    // Predicated region
    $region6: #{_attn_vis_impl.1} parent=1 // pred_check
      _
    $region7: #{_attn_vis_impl.1} parent=1 // pred_check_branch
      %20 = sbr.rel (0) target = $region9
    $region8: #{_attn_vis_impl.1} parent=1 // pred_region
      _
    $region9: #{_attn_vis_impl.1} parent=1 // pred_fallthru
      _
    // Predicated region
    $region10: #{_attn_vis_impl.1} parent=1 // pred_check
      _
    $region11: #{_attn_vis_impl.1} parent=1 // pred_check_branch
      %22 = sbr.rel (0) target = $region13
    $region12: #{_attn_vis_impl.1} parent=1 // pred_region
      _
    $region13: #{_attn_vis_impl.1} parent=1 // pred_fallthru
      _
    // Predicated region
    $region14: #{_attn_vis_impl.1} parent=1 // pred_check
      _
    $region15: #{_attn_vis_impl.1} parent=1 // pred_check_branch
      %24 = sbr.rel (0) target = $region17
    $region16: #{_attn_vis_impl.1} parent=1 // pred_region
      _
    $region17: #{_attn_vis_impl.1} parent=1 // pred_fallthru
      _
    // Predicated region
    $region18: #{_attn_vis_impl.1} parent=1 // pred_check
      _
    $region19: #{_attn_vis_impl.1} parent=1 // pred_check_branch
      %26 = sbr.rel (0) target = $region21
    $region20: #{_attn_vis_impl.1} parent=1 // pred_region
      _
    $region21: #{_attn_vis_impl.1} parent=1 // pred_fallthru
      _
    // Predicated region
    $region22: #{_attn_vis_impl.1} parent=1 // pred_check
      _
    $region23: #{_attn_vis_impl.1} parent=1 // pred_check_branch
      %28 = sbr.rel (0) target = $region25
    $region24: #{_attn_vis_impl.1} parent=1 // pred_region
      _
    $region25: #{_attn_vis_impl.1} parent=1 // pred_fallthru
      _
    // Predicated region
    $region26: #{_attn_vis_impl.1} parent=1 // pred_check
      _
    $region27: #{_attn_vis_impl.1} parent=1 // pred_check_branch
      %30 = sbr.rel (0) target = $region29
    $region28: #{_attn_vis_impl.1} parent=1 // pred_region
      _
    $region29: #{_attn_vis_impl.1} parent=1 // pred_fallthru
      _
    // Predicated region
    $region30: #{_attn_vis_impl.1} parent=1 // pred_check
      _
    $region31: #{_attn_vis_impl.1} parent=1 // pred_check_branch
      %32 = sbr.rel (0) target = $region33
    $region32: #{_attn_vis_impl.1} parent=1 // pred_region
      _
    $region33: #{_attn_vis_impl.1} parent=1 // pred_fallthru
      _
    %v33 = vld [vmem:[%s0] sm:$0xff]
    %v34 = vld [vmem:[%s0 + $0x8] sm:$0xff]
    %v35 = vld [vmem:[%s0 + $0x10] sm:$0xff]
    %v36 = vld [vmem:[%s1] sm:$0xff]
    %v37 = vld [vmem:[%s1 + $0x8] sm:$0xff]
    %v38 = vld [vmem:[%s1 + $0x10] sm:$0xff]
    %vm39 = vcmask 195584
    %v41 = vsel %vm39, %v33, 0
    %v44 = vsel %vm39, %v34, 0
    %v47 = vsel %vm39, %v35, 0
    %49 = vmatpush.msra.mxu0 0.0
    %50 = vmatpush.msra.mxu0 0.0
    %51 = vmatpush.msra.mxu0 0.0
    %52 = vmatpush.msra.mxu0 0.0
    %53 = vmatpush.msra.mxu0 0.0
    %54 = vmatpush.msra.mxu0 0.0
    %55 = vmatpush.msra.mxu0 0.0
    %56 = vmatpush.msra.mxu0 0.0
    %57 = vmatpush.msra.mxu0 0.0
    %58 = vmatpush.msra.mxu0 0.0
    %59 = vmatpush.msra.mxu0 0.0
    %60 = vmatpush.msra.mxu0 0.0
    %61 = vmatpush.msra.mxu0 0.0
    %62 = vmatpush.msra.mxu0 %v38
    %63 = vmatpush.msra.mxu0 %v37
    %64 = vmatpush.msra.mxu0 %v36
    %65 = vmatmul.f32.gmra.mxu0 %v41
    %v66 = vpop.f32.mrf.mxu0
    %v67 = vadd.f32 0.0, %v66
    %68 = vmatmul.f32.gmra.mxu0 %v44
    %v69 = vpop.f32.mrf.mxu0
    %v70 = vadd.f32 0.0, %v69
    %71 = vmatmul.f32.gmra.mxu0 %v47
    %v72 = vpop.f32.mrf.mxu0
    %v73 = vadd.f32 0.0, %v72
    %74 = vdwg.mxu0
    %v75 = vld [vmem:[%s2] sm:$0xff]
    %v76 = vld [vmem:[%s2 + $0x8] sm:$0xff]
    %v77 = vld [vmem:[%s2 + $0x10] sm:$0xff]
    %v78 = vld [vmem:[%s2 + $0x18] sm:$0xff]
    %v79 = vld [vmem:[%s2 + $0x20] sm:$0xff]
    %v80 = vld [vmem:[%s2 + $0x28] sm:$0xff]
    %v81 = vld [vmem:[%s2 + $0x30] sm:$0xff]
    %v82 = vld [vmem:[%s2 + $0x38] sm:$0xff]
    %v83 = vld [vmem:[%s2 + $0x40] sm:$0xff]
    %v84 = vld [vmem:[%s2 + $0x48] sm:$0xff]
    %v85 = vld [vmem:[%s2 + $0x50] sm:$0xff]
    %v86 = vld [vmem:[%s2 + $0x58] sm:$0xff]
    %v87 = vld [vmem:[%s2 + $0x60] sm:$0xff]
    %v88 = vld [vmem:[%s2 + $0x68] sm:$0xff]
    %v89 = vld [vmem:[%s2 + $0x70] sm:$0xff]
    %v90 = vld [vmem:[%s2 + $0x78] sm:$0xff]
    %v91 = vld [vmem:[%s2 + $0x80] sm:$0xff]
    %v92 = vld [vmem:[%s2 + $0x88] sm:$0xff]
    %v93 = vld [vmem:[%s2 + $0x90] sm:$0xff]
    %v94 = vld [vmem:[%s2 + $0x98] sm:$0xff]
    %v95 = vld [vmem:[%s2 + $0xa0] sm:$0xff]
    %v96 = vld [vmem:[%s2 + $0xa8] sm:$0xff]
    %v97 = vld [vmem:[%s2 + $0xb0] sm:$0xff]
    %v98 = vld [vmem:[%s2 + $0xb8] sm:$0xff]
    %v99 = vld [vmem:[%s2 + $0xc0] sm:$0xff]
    %v100 = vld [vmem:[%s2 + $0xc8] sm:$0xff]
    %v101 = vld [vmem:[%s2 + $0xd0] sm:$0xff]
    %v102 = vld [vmem:[%s2 + $0xd8] sm:$0xff]
    %v103 = vld [vmem:[%s2 + $0xe0] sm:$0xff]
    %v104 = vld [vmem:[%s2 + $0xe8] sm:$0xff]
    %v106 = vsel %vm39, %v75, 0
    %v109 = vsel %vm39, %v76, 0
    %v112 = vsel %vm39, %v77, 0
    %v115 = vsel %vm39, %v78, 0
    %v118 = vsel %vm39, %v79, 0
    %v121 = vsel %vm39, %v80, 0
    %v124 = vsel %vm39, %v81, 0
    %v127 = vsel %vm39, %v82, 0
    %v130 = vsel %vm39, %v83, 0
    %v133 = vsel %vm39, %v84, 0
    %v136 = vsel %vm39, %v85, 0
    %v139 = vsel %vm39, %v86, 0
    %v142 = vsel %vm39, %v87, 0
    %v145 = vsel %vm39, %v88, 0
    %v148 = vsel %vm39, %v89, 0
    %v151 = vsel %vm39, %v90, 0
    %v154 = vsel %vm39, %v91, 0
    %v157 = vsel %vm39, %v92, 0
    %v160 = vsel %vm39, %v93, 0
    %v163 = vsel %vm39, %v94, 0
    %v166 = vsel %vm39, %v95, 0
    %v169 = vsel %vm39, %v96, 0
    %v172 = vsel %vm39, %v97, 0
    %v175 = vsel %vm39, %v98, 0
    %v178 = vsel %vm39, %v99, 0
    %v181 = vsel %vm39, %v100, 0
    %v184 = vsel %vm39, %v101, 0
    %v187 = vsel %vm39, %v102, 0
    %v190 = vsel %vm39, %v103, 0
    %v193 = vsel %vm39, %v104, 0
    %195 = vmatpush.msra.mxu0 0.0
    %196 = vmatpush.msra.mxu0 0.0
    %197 = vmatpush.msra.mxu0 0.0
    %198 = vmatpush.msra.mxu0 0.0
    %199 = vmatpush.msra.mxu0 0.0
    %200 = vmatpush.msra.mxu0 0.0
    %201 = vmatpush.msra.mxu0 0.0
    %202 = vmatpush.msra.mxu0 0.0
    %203 = vmatpush.msra.mxu0 0.0
    %204 = vmatpush.msra.mxu0 0.0
    %205 = vmatpush.msra.mxu0 0.0
    %206 = vmatpush.msra.mxu0 0.0
    %207 = vmatpush.msra.mxu0 0.0
    %208 = vmatpush.msra.mxu0 %v73
    %209 = vmatpush.msra.mxu0 %v70
    %210 = vmatpush.msra.mxu0 %v67
    %211 = vmatmul.f32.gmra.mxu0 %v106
    %v212 = vpop.f32.mrf.mxu0
    %v213 = vadd.f32 0.0, %v212
    %214 = vmatmul.f32.gmra.mxu0 %v109
    %v215 = vpop.f32.mrf.mxu0
    %v216 = vadd.f32 0.0, %v215
    %217 = vmatmul.f32.gmra.mxu0 %v112
    %v218 = vpop.f32.mrf.mxu0
    %v219 = vadd.f32 0.0, %v218
    %220 = vmatmul.f32.gmra.mxu0 %v115
    %v221 = vpop.f32.mrf.mxu0
    %v222 = vadd.f32 0.0, %v221
    %223 = vmatmul.f32.gmra.mxu0 %v118
    %v224 = vpop.f32.mrf.mxu0
    %v225 = vadd.f32 0.0, %v224
    %226 = vmatmul.f32.gmra.mxu0 %v121
    %v227 = vpop.f32.mrf.mxu0
    %v228 = vadd.f32 0.0, %v227
    %229 = vmatmul.f32.gmra.mxu0 %v124
    %v230 = vpop.f32.mrf.mxu0
    %v231 = vadd.f32 0.0, %v230
    %232 = vmatmul.f32.gmra.mxu0 %v127
    %v233 = vpop.f32.mrf.mxu0
    %v234 = vadd.f32 0.0, %v233
    %235 = vmatmul.f32.gmra.mxu0 %v130
    %v236 = vpop.f32.mrf.mxu0
    %v237 = vadd.f32 0.0, %v236
    %238 = vmatmul.f32.gmra.mxu0 %v133
    %v239 = vpop.f32.mrf.mxu0
    %v240 = vadd.f32 0.0, %v239
    %241 = vmatmul.f32.gmra.mxu0 %v136
    %v242 = vpop.f32.mrf.mxu0
    %v243 = vadd.f32 0.0, %v242
    %244 = vmatmul.f32.gmra.mxu0 %v139
    %v245 = vpop.f32.mrf.mxu0
    %v246 = vadd.f32 0.0, %v245
    %247 = vmatmul.f32.gmra.mxu0 %v142
    %v248 = vpop.f32.mrf.mxu0
    %v249 = vadd.f32 0.0, %v248
    %250 = vmatmul.f32.gmra.mxu0 %v145
    %v251 = vpop.f32.mrf.mxu0
    %v252 = vadd.f32 0.0, %v251
    %253 = vmatmul.f32.gmra.mxu0 %v148
    %v254 = vpop.f32.mrf.mxu0
    %v255 = vadd.f32 0.0, %v254
    %256 = vmatmul.f32.gmra.mxu0 %v151
    %v257 = vpop.f32.mrf.mxu0
    %v258 = vadd.f32 0.0, %v257
    %259 = vmatmul.f32.gmra.mxu0 %v154
    %v260 = vpop.f32.mrf.mxu0
    %v261 = vadd.f32 0.0, %v260
    %262 = vmatmul.f32.gmra.mxu0 %v157
    %v263 = vpop.f32.mrf.mxu0
    %v264 = vadd.f32 0.0, %v263
    %265 = vmatmul.f32.gmra.mxu0 %v160
    %v266 = vpop.f32.mrf.mxu0
    %v267 = vadd.f32 0.0, %v266
    %268 = vmatmul.f32.gmra.mxu0 %v163
    %v269 = vpop.f32.mrf.mxu0
    %v270 = vadd.f32 0.0, %v269
    %271 = vmatmul.f32.gmra.mxu0 %v166
    %v272 = vpop.f32.mrf.mxu0
    %v273 = vadd.f32 0.0, %v272
    %274 = vmatmul.f32.gmra.mxu0 %v169
    %v275 = vpop.f32.mrf.mxu0
    %v276 = vadd.f32 0.0, %v275
    %277 = vmatmul.f32.gmra.mxu0 %v172
    %v278 = vpop.f32.mrf.mxu0
    %v279 = vadd.f32 0.0, %v278
    %280 = vmatmul.f32.gmra.mxu0 %v175
    %v281 = vpop.f32.mrf.mxu0
    %v282 = vadd.f32 0.0, %v281
    %283 = vmatmul.f32.gmra.mxu0 %v178
    %v284 = vpop.f32.mrf.mxu0
    %v285 = vadd.f32 0.0, %v284
    %286 = vmatmul.f32.gmra.mxu0 %v181
    %v287 = vpop.f32.mrf.mxu0
    %v288 = vadd.f32 0.0, %v287
    %289 = vmatmul.f32.gmra.mxu0 %v184
    %v290 = vpop.f32.mrf.mxu0
    %v291 = vadd.f32 0.0, %v290
    %292 = vmatmul.f32.gmra.mxu0 %v187
    %v293 = vpop.f32.mrf.mxu0
    %v294 = vadd.f32 0.0, %v293
    %295 = vmatmul.f32.gmra.mxu0 %v190
    %v296 = vpop.f32.mrf.mxu0
    %v297 = vadd.f32 0.0, %v296
    %298 = vmatmul.f32.gmra.mxu0 %v193
    %v299 = vpop.f32.mrf.mxu0
    %v300 = vadd.f32 0.0, %v299
    %301 = vdwg.mxu0
    %vm302 = vcmask 392192
    %303 = vst.msk [vmem:[#allocation2] sm:$0xff] %vm302, %v213
    %304 = vst.msk [vmem:[#allocation2 + $0x8] sm:$0xff] %vm302, %v216
    %305 = vst.msk [vmem:[#allocation2 + $0x10] sm:$0xff] %vm302, %v219
    %306 = vst.msk [vmem:[#allocation2 + $0x18] sm:$0xff] %vm302, %v222
    %307 = vst.msk [vmem:[#allocation2 + $0x20] sm:$0xff] %vm302, %v225
    %308 = vst.msk [vmem:[#allocation2 + $0x28] sm:$0xff] %vm302, %v228
    %309 = vst.msk [vmem:[#allocation2 + $0x30] sm:$0xff] %vm302, %v231
    %310 = vst.msk [vmem:[#allocation2 + $0x38] sm:$0xff] %vm302, %v234
    %311 = vst.msk [vmem:[#allocation2 + $0x40] sm:$0xff] %vm302, %v237
    %312 = vst.msk [vmem:[#allocation2 + $0x48] sm:$0xff] %vm302, %v240
    %313 = vst.msk [vmem:[#allocation2 + $0x50] sm:$0xff] %vm302, %v243
    %314 = vst.msk [vmem:[#allocation2 + $0x58] sm:$0xff] %vm302, %v246
    %315 = vst.msk [vmem:[#allocation2 + $0x60] sm:$0xff] %vm302, %v249
    %316 = vst.msk [vmem:[#allocation2 + $0x68] sm:$0xff] %vm302, %v252
    %317 = vst.msk [vmem:[#allocation2 + $0x70] sm:$0xff] %vm302, %v255
    %318 = vst.msk [vmem:[#allocation2 + $0x78] sm:$0xff] %vm302, %v258
    %319 = vst.msk [vmem:[#allocation2 + $0x80] sm:$0xff] %vm302, %v261
    %320 = vst.msk [vmem:[#allocation2 + $0x88] sm:$0xff] %vm302, %v264
    %321 = vst.msk [vmem:[#allocation2 + $0x90] sm:$0xff] %vm302, %v267
    %322 = vst.msk [vmem:[#allocation2 + $0x98] sm:$0xff] %vm302, %v270
    %323 = vst.msk [vmem:[#allocation2 + $0xa0] sm:$0xff] %vm302, %v273
    %324 = vst.msk [vmem:[#allocation2 + $0xa8] sm:$0xff] %vm302, %v276
    %325 = vst.msk [vmem:[#allocation2 + $0xb0] sm:$0xff] %vm302, %v279
    %326 = vst.msk [vmem:[#allocation2 + $0xb8] sm:$0xff] %vm302, %v282
    %327 = vst.msk [vmem:[#allocation2 + $0xc0] sm:$0xff] %vm302, %v285
    %328 = vst.msk [vmem:[#allocation2 + $0xc8] sm:$0xff] %vm302, %v288
    %329 = vst.msk [vmem:[#allocation2 + $0xd0] sm:$0xff] %vm302, %v291
    %330 = vst.msk [vmem:[#allocation2 + $0xd8] sm:$0xff] %vm302, %v294
    %331 = vst.msk [vmem:[#allocation2 + $0xe0] sm:$0xff] %vm302, %v297
    %332 = vst.msk [vmem:[#allocation2 + $0xe8] sm:$0xff] %vm302, %v300
    %v333 = vld [vmem:[#allocation2] sm:$0xff]
    %v334 = vld [vmem:[#allocation2 + $0x8] sm:$0xff]
    %v335 = vld [vmem:[#allocation2 + $0x10] sm:$0xff]
    %v336 = vld [vmem:[#allocation2 + $0x18] sm:$0xff]
    %v337 = vld [vmem:[#allocation2 + $0x20] sm:$0xff]
    %v338 = vld [vmem:[#allocation2 + $0x28] sm:$0xff]
    %v339 = vld [vmem:[%s3] sm:$0xff]
    %v340 = vld [vmem:[%s3 + $0x8] sm:$0xff]
    %v341 = vld [vmem:[%s3 + $0x10] sm:$0xff]
    %v342 = vld [vmem:[%s3 + $0x18] sm:$0xff]
    %v343 = vld [vmem:[%s3 + $0x20] sm:$0xff]
    %v344 = vld [vmem:[%s3 + $0x28] sm:$0xff]
    %v345 = vld [vmem:[#allocation2 + $0x30] sm:$0xff]
    %v346 = vld [vmem:[#allocation2 + $0x38] sm:$0xff]
    %v347 = vld [vmem:[#allocation2 + $0x40] sm:$0xff]
    %v348 = vld [vmem:[#allocation2 + $0x48] sm:$0xff]
    %v349 = vld [vmem:[#allocation2 + $0x50] sm:$0xff]
    %v350 = vld [vmem:[#allocation2 + $0x58] sm:$0xff]
    %v351 = vld [vmem:[%s3 + $0x30] sm:$0xff]
    %v352 = vld [vmem:[%s3 + $0x38] sm:$0xff]
    %v353 = vld [vmem:[%s3 + $0x40] sm:$0xff]
    %v354 = vld [vmem:[%s3 + $0x48] sm:$0xff]
    %v355 = vld [vmem:[%s3 + $0x50] sm:$0xff]
    %v356 = vld [vmem:[%s3 + $0x58] sm:$0xff]
    %v358 = vsel %vm302, %v345, 0
    %v361 = vsel %vm302, %v346, 0
    %v364 = vsel %vm302, %v347, 0
    %v367 = vsel %vm302, %v348, 0
    %v370 = vsel %vm302, %v349, 0
    %v373 = vsel %vm302, %v350, 0
    %375 = vmatpush.msra.mxu0 0.0
    %376 = vmatpush.msra.mxu0 0.0
    %377 = vmatpush.msra.mxu0 0.0
    %378 = vmatpush.msra.mxu0 0.0
    %379 = vmatpush.msra.mxu0 0.0
    %380 = vmatpush.msra.mxu0 0.0
    %381 = vmatpush.msra.mxu0 0.0
    %382 = vmatpush.msra.mxu0 0.0
    %383 = vmatpush.msra.mxu0 0.0
    %384 = vmatpush.msra.mxu0 0.0
    %385 = vmatpush.msra.mxu0 %v356
    %386 = vmatpush.msra.mxu0 %v355
    %387 = vmatpush.msra.mxu0 %v354
    %388 = vmatpush.msra.mxu0 %v353
    %389 = vmatpush.msra.mxu0 %v352
    %390 = vmatpush.msra.mxu0 %v351
    %391 = vmatmul.f32.gmra.mxu0 %v358
    %v392 = vpop.f32.mrf.mxu0
    %v393 = vadd.f32 0.0, %v392
    %394 = vmatmul.f32.gmra.mxu0 %v361
    %v395 = vpop.f32.mrf.mxu0
    %v396 = vadd.f32 0.0, %v395
    %397 = vmatmul.f32.gmra.mxu0 %v364
    %v398 = vpop.f32.mrf.mxu0
    %v399 = vadd.f32 0.0, %v398
    %400 = vmatmul.f32.gmra.mxu0 %v367
    %v401 = vpop.f32.mrf.mxu0
    %v402 = vadd.f32 0.0, %v401
    %403 = vmatmul.f32.gmra.mxu0 %v370
    %v404 = vpop.f32.mrf.mxu0
    %v405 = vadd.f32 0.0, %v404
    %406 = vmatmul.f32.gmra.mxu0 %v373
    %v407 = vpop.f32.mrf.mxu0
    %v408 = vadd.f32 0.0, %v407
    %409 = vdwg.mxu0
    %v411 = vsel %vm302, %v333, 0
    %v414 = vsel %vm302, %v334, 0
    %v417 = vsel %vm302, %v335, 0
    %v420 = vsel %vm302, %v336, 0
    %v423 = vsel %vm302, %v337, 0
    %v426 = vsel %vm302, %v338, 0
    %428 = vmatpush.msra.mxu0 0.0
    %429 = vmatpush.msra.mxu0 0.0
    %430 = vmatpush.msra.mxu0 0.0
    %431 = vmatpush.msra.mxu0 0.0
    %432 = vmatpush.msra.mxu0 0.0
    %433 = vmatpush.msra.mxu0 0.0
    %434 = vmatpush.msra.mxu0 0.0
    %435 = vmatpush.msra.mxu0 0.0
    %436 = vmatpush.msra.mxu0 0.0
    %437 = vmatpush.msra.mxu0 0.0
    %438 = vmatpush.msra.mxu0 %v344
    %439 = vmatpush.msra.mxu0 %v343
    %440 = vmatpush.msra.mxu0 %v342
    %441 = vmatpush.msra.mxu0 %v341
    %442 = vmatpush.msra.mxu0 %v340
    %443 = vmatpush.msra.mxu0 %v339
    %444 = vmatmul.f32.gmra.mxu0 %v411
    %v445 = vpop.f32.mrf.mxu0
    %v446 = vadd.f32 %v393, %v445
    %447 = vmatmul.f32.gmra.mxu0 %v414
    %v448 = vpop.f32.mrf.mxu0
    %v449 = vadd.f32 %v396, %v448
    %450 = vmatmul.f32.gmra.mxu0 %v417
    %v451 = vpop.f32.mrf.mxu0
    %v452 = vadd.f32 %v399, %v451
    %453 = vmatmul.f32.gmra.mxu0 %v420
    %v454 = vpop.f32.mrf.mxu0
    %v455 = vadd.f32 %v402, %v454
    %456 = vmatmul.f32.gmra.mxu0 %v423
    %v457 = vpop.f32.mrf.mxu0
    %v458 = vadd.f32 %v405, %v457
    %459 = vmatmul.f32.gmra.mxu0 %v426
    %v460 = vpop.f32.mrf.mxu0
    %v461 = vadd.f32 %v408, %v460
    %462 = vdwg.mxu0
    %v463 = vld [vmem:[#allocation2 + $0x60] sm:$0xff]
    %v464 = vld [vmem:[#allocation2 + $0x68] sm:$0xff]
    %v465 = vld [vmem:[#allocation2 + $0x70] sm:$0xff]
    %v466 = vld [vmem:[#allocation2 + $0x78] sm:$0xff]
    %v467 = vld [vmem:[#allocation2 + $0x80] sm:$0xff]
    %v468 = vld [vmem:[#allocation2 + $0x88] sm:$0xff]
    %v469 = vld [vmem:[%s3 + $0x60] sm:$0xff]
    %v470 = vld [vmem:[%s3 + $0x68] sm:$0xff]
    %v471 = vld [vmem:[%s3 + $0x70] sm:$0xff]
    %v472 = vld [vmem:[%s3 + $0x78] sm:$0xff]
    %v473 = vld [vmem:[%s3 + $0x80] sm:$0xff]
    %v474 = vld [vmem:[%s3 + $0x88] sm:$0xff]
    %v476 = vsel %vm302, %v463, 0
    %v479 = vsel %vm302, %v464, 0
    %v482 = vsel %vm302, %v465, 0
    %v485 = vsel %vm302, %v466, 0
    %v488 = vsel %vm302, %v467, 0
    %v491 = vsel %vm302, %v468, 0
    %493 = vmatpush.msra.mxu0 0.0
    %494 = vmatpush.msra.mxu0 0.0
    %495 = vmatpush.msra.mxu0 0.0
    %496 = vmatpush.msra.mxu0 0.0
    %497 = vmatpush.msra.mxu0 0.0
    %498 = vmatpush.msra.mxu0 0.0
    %499 = vmatpush.msra.mxu0 0.0
    %500 = vmatpush.msra.mxu0 0.0
    %501 = vmatpush.msra.mxu0 0.0
    %502 = vmatpush.msra.mxu0 0.0
    %503 = vmatpush.msra.mxu0 %v474
    %504 = vmatpush.msra.mxu0 %v473
    %505 = vmatpush.msra.mxu0 %v472
    %506 = vmatpush.msra.mxu0 %v471
    %507 = vmatpush.msra.mxu0 %v470
    %508 = vmatpush.msra.mxu0 %v469
    %509 = vmatmul.f32.gmra.mxu0 %v476
    %v510 = vpop.f32.mrf.mxu0
    %v511 = vadd.f32 0.0, %v510
    %512 = vmatmul.f32.gmra.mxu0 %v479
    %v513 = vpop.f32.mrf.mxu0
    %v514 = vadd.f32 0.0, %v513
    %515 = vmatmul.f32.gmra.mxu0 %v482
    %v516 = vpop.f32.mrf.mxu0
    %v517 = vadd.f32 0.0, %v516
    %518 = vmatmul.f32.gmra.mxu0 %v485
    %v519 = vpop.f32.mrf.mxu0
    %v520 = vadd.f32 0.0, %v519
    %521 = vmatmul.f32.gmra.mxu0 %v488
    %v522 = vpop.f32.mrf.mxu0
    %v523 = vadd.f32 0.0, %v522
    %524 = vmatmul.f32.gmra.mxu0 %v491
    %v525 = vpop.f32.mrf.mxu0
    %v526 = vadd.f32 0.0, %v525
    %527 = vdwg.mxu0
    %v528 = vadd.f32 %v446, %v511
    %v529 = vadd.f32 %v449, %v514
    %v530 = vadd.f32 %v452, %v517
    %v531 = vadd.f32 %v455, %v520
    %v532 = vadd.f32 %v458, %v523
    %v533 = vadd.f32 %v461, %v526
    %v534 = vld [vmem:[#allocation2 + $0x90] sm:$0xff]
    %v535 = vld [vmem:[#allocation2 + $0x98] sm:$0xff]
    %v536 = vld [vmem:[#allocation2 + $0xa0] sm:$0xff]
    %v537 = vld [vmem:[#allocation2 + $0xa8] sm:$0xff]
    %v538 = vld [vmem:[#allocation2 + $0xb0] sm:$0xff]
    %v539 = vld [vmem:[#allocation2 + $0xb8] sm:$0xff]
    %v540 = vld [vmem:[%s3 + $0x90] sm:$0xff]
    %v541 = vld [vmem:[%s3 + $0x98] sm:$0xff]
    %v542 = vld [vmem:[%s3 + $0xa0] sm:$0xff]
    %v543 = vld [vmem:[%s3 + $0xa8] sm:$0xff]
    %v544 = vld [vmem:[%s3 + $0xb0] sm:$0xff]
    %v545 = vld [vmem:[%s3 + $0xb8] sm:$0xff]
    %v547 = vsel %vm302, %v534, 0
    %v550 = vsel %vm302, %v535, 0
    %v553 = vsel %vm302, %v536, 0
    %v556 = vsel %vm302, %v537, 0
    %v559 = vsel %vm302, %v538, 0
    %v562 = vsel %vm302, %v539, 0
    %564 = vmatpush.msra.mxu0 0.0
    %565 = vmatpush.msra.mxu0 0.0
    %566 = vmatpush.msra.mxu0 0.0
    %567 = vmatpush.msra.mxu0 0.0
    %568 = vmatpush.msra.mxu0 0.0
    %569 = vmatpush.msra.mxu0 0.0
    %570 = vmatpush.msra.mxu0 0.0
    %571 = vmatpush.msra.mxu0 0.0
    %572 = vmatpush.msra.mxu0 0.0
    %573 = vmatpush.msra.mxu0 0.0
    %574 = vmatpush.msra.mxu0 %v545
    %575 = vmatpush.msra.mxu0 %v544
    %576 = vmatpush.msra.mxu0 %v543
    %577 = vmatpush.msra.mxu0 %v542
    %578 = vmatpush.msra.mxu0 %v541
    %579 = vmatpush.msra.mxu0 %v540
    %580 = vmatmul.f32.gmra.mxu0 %v547
    %v581 = vpop.f32.mrf.mxu0
    %v582 = vadd.f32 0.0, %v581
    %583 = vmatmul.f32.gmra.mxu0 %v550
    %v584 = vpop.f32.mrf.mxu0
    %v585 = vadd.f32 0.0, %v584
    %586 = vmatmul.f32.gmra.mxu0 %v553
    %v587 = vpop.f32.mrf.mxu0
    %v588 = vadd.f32 0.0, %v587
    %589 = vmatmul.f32.gmra.mxu0 %v556
    %v590 = vpop.f32.mrf.mxu0
    %v591 = vadd.f32 0.0, %v590
    %592 = vmatmul.f32.gmra.mxu0 %v559
    %v593 = vpop.f32.mrf.mxu0
    %v594 = vadd.f32 0.0, %v593
    %595 = vmatmul.f32.gmra.mxu0 %v562
    %v596 = vpop.f32.mrf.mxu0
    %v597 = vadd.f32 0.0, %v596
    %598 = vdwg.mxu0
    %v599 = vadd.f32 %v528, %v582
    %v600 = vadd.f32 %v529, %v585
    %v601 = vadd.f32 %v530, %v588
    %v602 = vadd.f32 %v531, %v591
    %v603 = vadd.f32 %v532, %v594
    %v604 = vadd.f32 %v533, %v597
    %v605 = vld [vmem:[#allocation2 + $0xc0] sm:$0xff]
    %v606 = vld [vmem:[#allocation2 + $0xc8] sm:$0xff]
    %v607 = vld [vmem:[#allocation2 + $0xd0] sm:$0xff]
    %v608 = vld [vmem:[#allocation2 + $0xd8] sm:$0xff]
    %v609 = vld [vmem:[#allocation2 + $0xe0] sm:$0xff]
    %v610 = vld [vmem:[#allocation2 + $0xe8] sm:$0xff]
    %v611 = vld [vmem:[%s3 + $0xc0] sm:$0xff]
    %v612 = vld [vmem:[%s3 + $0xc8] sm:$0xff]
    %v613 = vld [vmem:[%s3 + $0xd0] sm:$0xff]
    %v614 = vld [vmem:[%s3 + $0xd8] sm:$0xff]
    %v615 = vld [vmem:[%s3 + $0xe0] sm:$0xff]
    %v616 = vld [vmem:[%s3 + $0xe8] sm:$0xff]
    %v618 = vsel %vm302, %v605, 0
    %v621 = vsel %vm302, %v606, 0
    %v624 = vsel %vm302, %v607, 0
    %v627 = vsel %vm302, %v608, 0
    %v630 = vsel %vm302, %v609, 0
    %v633 = vsel %vm302, %v610, 0
    %635 = vmatpush.msra.mxu0 0.0
    %636 = vmatpush.msra.mxu0 0.0
    %637 = vmatpush.msra.mxu0 0.0
    %638 = vmatpush.msra.mxu0 0.0
    %639 = vmatpush.msra.mxu0 0.0
    %640 = vmatpush.msra.mxu0 0.0
    %641 = vmatpush.msra.mxu0 0.0
    %642 = vmatpush.msra.mxu0 0.0
    %643 = vmatpush.msra.mxu0 0.0
    %644 = vmatpush.msra.mxu0 0.0
    %645 = vmatpush.msra.mxu0 %v616
    %646 = vmatpush.msra.mxu0 %v615
    %647 = vmatpush.msra.mxu0 %v614
    %648 = vmatpush.msra.mxu0 %v613
    %649 = vmatpush.msra.mxu0 %v612
    %650 = vmatpush.msra.mxu0 %v611
    %651 = vmatmul.f32.gmra.mxu0 %v618
    %v652 = vpop.f32.mrf.mxu0
    %v653 = vadd.f32 0.0, %v652
    %654 = vmatmul.f32.gmra.mxu0 %v621
    %v655 = vpop.f32.mrf.mxu0
    %v656 = vadd.f32 0.0, %v655
    %657 = vmatmul.f32.gmra.mxu0 %v624
    %v658 = vpop.f32.mrf.mxu0
    %v659 = vadd.f32 0.0, %v658
    %660 = vmatmul.f32.gmra.mxu0 %v627
    %v661 = vpop.f32.mrf.mxu0
    %v662 = vadd.f32 0.0, %v661
    %663 = vmatmul.f32.gmra.mxu0 %v630
    %v664 = vpop.f32.mrf.mxu0
    %v665 = vadd.f32 0.0, %v664
    %666 = vmatmul.f32.gmra.mxu0 %v633
    %v667 = vpop.f32.mrf.mxu0
    %v668 = vadd.f32 0.0, %v667
    %669 = vdwg.mxu0
    %v670 = vadd.f32 %v599, %v653
    %v671 = vadd.f32 %v600, %v656
    %v672 = vadd.f32 %v601, %v659
    %v673 = vadd.f32 %v602, %v662
    %v674 = vadd.f32 %v603, %v665
    %v675 = vadd.f32 %v604, %v668
    %v676 = vld [vmem:[%s4] sm:$0xff]
    %v677 = vld [vmem:[%s4 + $0x8] sm:$0xff]
    %v678 = vld [vmem:[%s4 + $0x10] sm:$0xff]
    %v679 = vld [vmem:[%s4 + $0x18] sm:$0xff]
    %v680 = vld [vmem:[%s4 + $0x20] sm:$0xff]
    %v681 = vld [vmem:[%s4 + $0x28] sm:$0xff]
    %v683 = vsel %vm302, %v670, 0
    %v686 = vsel %vm302, %v671, 0
    %v689 = vsel %vm302, %v672, 0
    %v692 = vsel %vm302, %v673, 0
    %v695 = vsel %vm302, %v674, 0
    %v698 = vsel %vm302, %v675, 0
    %700 = vmatpush.msra.mxu0 0.0
    %701 = vmatpush.msra.mxu0 0.0
    %702 = vmatpush.msra.mxu0 0.0
    %703 = vmatpush.msra.mxu0 0.0
    %704 = vmatpush.msra.mxu0 0.0
    %705 = vmatpush.msra.mxu0 0.0
    %706 = vmatpush.msra.mxu0 0.0
    %707 = vmatpush.msra.mxu0 0.0
    %708 = vmatpush.msra.mxu0 0.0
    %709 = vmatpush.msra.mxu0 0.0
    %710 = vmatpush.msra.mxu0 %v681
    %711 = vmatpush.msra.mxu0 %v680
    %712 = vmatpush.msra.mxu0 %v679
    %713 = vmatpush.msra.mxu0 %v678
    %714 = vmatpush.msra.mxu0 %v677
    %715 = vmatpush.msra.mxu0 %v676
    %716 = vmatmul.f32.gmra.mxu0 %v683
    %v717 = vpop.f32.mrf.mxu0
    %v718 = vadd.f32 0.0, %v717
    %719 = vmatmul.f32.gmra.mxu0 %v686
    %v720 = vpop.f32.mrf.mxu0
    %v721 = vadd.f32 0.0, %v720
    %722 = vmatmul.f32.gmra.mxu0 %v689
    %v723 = vpop.f32.mrf.mxu0
    %v724 = vadd.f32 0.0, %v723
    %725 = vmatmul.f32.gmra.mxu0 %v692
    %v726 = vpop.f32.mrf.mxu0
    %v727 = vadd.f32 0.0, %v726
    %728 = vmatmul.f32.gmra.mxu0 %v695
    %v729 = vpop.f32.mrf.mxu0
    %v730 = vadd.f32 0.0, %v729
    %731 = vmatmul.f32.gmra.mxu0 %v698
    %v732 = vpop.f32.mrf.mxu0
    %v733 = vadd.f32 0.0, %v732
    %734 = vdwg.mxu0
    %v735 = vld [vmem:[%s5] sm:$0xff]
    %v736 = vld [vmem:[%s5 + $0x8] sm:$0xff]
    %v737 = vld [vmem:[%s5 + $0x10] sm:$0xff]
    %v738 = vld [vmem:[%s5 + $0x18] sm:$0xff]
    %v739 = vld [vmem:[%s5 + $0x20] sm:$0xff]
    %v740 = vld [vmem:[%s5 + $0x28] sm:$0xff]
    %v741 = vld [vmem:[%s5 + $0x30] sm:$0xff]
    %v742 = vld [vmem:[%s5 + $0x38] sm:$0xff]
    %v743 = vld [vmem:[%s5 + $0x40] sm:$0xff]
    %v744 = vld [vmem:[%s5 + $0x48] sm:$0xff]
    %v745 = vld [vmem:[%s5 + $0x50] sm:$0xff]
    %v746 = vld [vmem:[%s5 + $0x58] sm:$0xff]
    %v747 = vld [vmem:[%s5 + $0x60] sm:$0xff]
    %v748 = vld [vmem:[%s5 + $0x68] sm:$0xff]
    %v749 = vld [vmem:[%s5 + $0x70] sm:$0xff]
    %v750 = vld [vmem:[%s5 + $0x78] sm:$0xff]
    %v751 = vld [vmem:[%s5 + $0x80] sm:$0xff]
    %v752 = vld [vmem:[%s5 + $0x88] sm:$0xff]
    %v753 = vld [vmem:[%s5 + $0x90] sm:$0xff]
    %v754 = vld [vmem:[%s5 + $0x98] sm:$0xff]
    %v755 = vld [vmem:[%s5 + $0xa0] sm:$0xff]
    %v756 = vld [vmem:[%s5 + $0xa8] sm:$0xff]
    %v757 = vld [vmem:[%s5 + $0xb0] sm:$0xff]
    %v758 = vld [vmem:[%s5 + $0xb8] sm:$0xff]
    %v759 = vld [vmem:[%s5 + $0xc0] sm:$0xff]
    %v760 = vld [vmem:[%s5 + $0xc8] sm:$0xff]
    %v761 = vld [vmem:[%s5 + $0xd0] sm:$0xff]
    %v762 = vld [vmem:[%s5 + $0xd8] sm:$0xff]
    %v763 = vld [vmem:[%s5 + $0xe0] sm:$0xff]
    %v764 = vld [vmem:[%s5 + $0xe8] sm:$0xff]
    %v765 = vld [vmem:[%s5 + $0xf0] sm:$0xff]
    %v766 = vld [vmem:[%s5 + $0xf8] sm:$0xff]
    %v767 = vld [vmem:[%s5 + $0x100] sm:$0xff]
    %v768 = vld [vmem:[%s5 + $0x108] sm:$0xff]
    %v769 = vld [vmem:[%s5 + $0x110] sm:$0xff]
    %v770 = vld [vmem:[%s5 + $0x118] sm:$0xff]
    %v771 = vld [vmem:[%s5 + $0x120] sm:$0xff]
    %v772 = vld [vmem:[%s5 + $0x128] sm:$0xff]
    %v773 = vld [vmem:[%s5 + $0x130] sm:$0xff]
    %v774 = vld [vmem:[%s5 + $0x138] sm:$0xff]
    %v775 = vld [vmem:[%s5 + $0x140] sm:$0xff]
    %v776 = vld [vmem:[%s5 + $0x148] sm:$0xff]
    %v777 = vld [vmem:[%s5 + $0x150] sm:$0xff]
    %v778 = vld [vmem:[%s5 + $0x158] sm:$0xff]
    %v779 = vld [vmem:[%s5 + $0x160] sm:$0xff]
    %v780 = vld [vmem:[%s5 + $0x168] sm:$0xff]
    %v781 = vld [vmem:[%s5 + $0x170] sm:$0xff]
    %v782 = vld [vmem:[%s5 + $0x178] sm:$0xff]
    %v783 = vld [vmem:[%s5 + $0x180] sm:$0xff]
    %v784 = vld [vmem:[%s5 + $0x188] sm:$0xff]
    %v785 = vld [vmem:[%s5 + $0x190] sm:$0xff]
    %v786 = vld [vmem:[%s5 + $0x198] sm:$0xff]
    %v787 = vld [vmem:[%s5 + $0x1a0] sm:$0xff]
    %v788 = vld [vmem:[%s5 + $0x1a8] sm:$0xff]
    %v789 = vld [vmem:[%s5 + $0x1b0] sm:$0xff]
    %v790 = vld [vmem:[%s5 + $0x1b8] sm:$0xff]
    %v791 = vld [vmem:[%s5 + $0x1c0] sm:$0xff]
    %v792 = vld [vmem:[%s5 + $0x1c8] sm:$0xff]
    %v793 = vld [vmem:[%s5 + $0x1d0] sm:$0xff]
    %v794 = vld [vmem:[%s5 + $0x1d8] sm:$0xff]
    %v796 = vsel %vm302, %v735, 0
    %v799 = vsel %vm302, %v736, 0
    %v802 = vsel %vm302, %v737, 0
    %v805 = vsel %vm302, %v738, 0
    %v808 = vsel %vm302, %v739, 0
    %v811 = vsel %vm302, %v740, 0
    %v814 = vsel %vm302, %v741, 0
    %v817 = vsel %vm302, %v742, 0
    %v820 = vsel %vm302, %v743, 0
    %v823 = vsel %vm302, %v744, 0
    %v826 = vsel %vm302, %v745, 0
    %v829 = vsel %vm302, %v746, 0
    %v832 = vsel %vm302, %v747, 0
    %v835 = vsel %vm302, %v748, 0
    %v838 = vsel %vm302, %v749, 0
    %v841 = vsel %vm302, %v750, 0
    %v844 = vsel %vm302, %v751, 0
    %v847 = vsel %vm302, %v752, 0
    %v850 = vsel %vm302, %v753, 0
    %v853 = vsel %vm302, %v754, 0
    %v856 = vsel %vm302, %v755, 0
    %v859 = vsel %vm302, %v756, 0
    %v862 = vsel %vm302, %v757, 0
    %v865 = vsel %vm302, %v758, 0
    %v868 = vsel %vm302, %v759, 0
    %v871 = vsel %vm302, %v760, 0
    %v874 = vsel %vm302, %v761, 0
    %v877 = vsel %vm302, %v762, 0
    %v880 = vsel %vm302, %v763, 0
    %v883 = vsel %vm302, %v764, 0
    %v886 = vsel %vm302, %v765, 0
    %v889 = vsel %vm302, %v766, 0
    %v892 = vsel %vm302, %v767, 0
    %v895 = vsel %vm302, %v768, 0
    %v898 = vsel %vm302, %v769, 0
    %v901 = vsel %vm302, %v770, 0
    %v904 = vsel %vm302, %v771, 0
    %v907 = vsel %vm302, %v772, 0
    %v910 = vsel %vm302, %v773, 0
    %v913 = vsel %vm302, %v774, 0
    %v916 = vsel %vm302, %v775, 0
    %v919 = vsel %vm302, %v776, 0
    %v922 = vsel %vm302, %v777, 0
    %v925 = vsel %vm302, %v778, 0
    %v928 = vsel %vm302, %v779, 0
    %v931 = vsel %vm302, %v780, 0
    %v934 = vsel %vm302, %v781, 0
    %v937 = vsel %vm302, %v782, 0
    %v940 = vsel %vm302, %v783, 0
    %v943 = vsel %vm302, %v784, 0
    %v946 = vsel %vm302, %v785, 0
    %v949 = vsel %vm302, %v786, 0
    %v952 = vsel %vm302, %v787, 0
    %v955 = vsel %vm302, %v788, 0
    %v958 = vsel %vm302, %v789, 0
    %v961 = vsel %vm302, %v790, 0
    %v964 = vsel %vm302, %v791, 0
    %v967 = vsel %vm302, %v792, 0
    %v970 = vsel %vm302, %v793, 0
    %v973 = vsel %vm302, %v794, 0
    %975 = vmatpush.msra.mxu0 0.0
    %976 = vmatpush.msra.mxu0 0.0
    %977 = vmatpush.msra.mxu0 0.0
    %978 = vmatpush.msra.mxu0 0.0
    %979 = vmatpush.msra.mxu0 0.0
    %980 = vmatpush.msra.mxu0 0.0
    %981 = vmatpush.msra.mxu0 0.0
    %982 = vmatpush.msra.mxu0 0.0
    %983 = vmatpush.msra.mxu0 0.0
    %984 = vmatpush.msra.mxu0 0.0
    %985 = vmatpush.msra.mxu0 %v733
    %986 = vmatpush.msra.mxu0 %v730
    %987 = vmatpush.msra.mxu0 %v727
    %988 = vmatpush.msra.mxu0 %v724
    %989 = vmatpush.msra.mxu0 %v721
    %990 = vmatpush.msra.mxu0 %v718
    %991 = vmatmul.f32.gmra.mxu0 %v796
    %v992 = vpop.f32.mrf.mxu0
    %v993 = vadd.f32 0.0, %v992
    %994 = vmatmul.f32.gmra.mxu0 %v799
    %v995 = vpop.f32.mrf.mxu0
    %v996 = vadd.f32 0.0, %v995
    %997 = vmatmul.f32.gmra.mxu0 %v802
    %v998 = vpop.f32.mrf.mxu0
    %v999 = vadd.f32 0.0, %v998
    %1000 = vmatmul.f32.gmra.mxu0 %v805
    %v1001 = vpop.f32.mrf.mxu0
    %v1002 = vadd.f32 0.0, %v1001
    %1003 = vmatmul.f32.gmra.mxu0 %v808
    %v1004 = vpop.f32.mrf.mxu0
    %v1005 = vadd.f32 0.0, %v1004
    %1006 = vmatmul.f32.gmra.mxu0 %v811
    %v1007 = vpop.f32.mrf.mxu0
    %v1008 = vadd.f32 0.0, %v1007
    %1009 = vmatmul.f32.gmra.mxu0 %v814
    %v1010 = vpop.f32.mrf.mxu0
    %v1011 = vadd.f32 0.0, %v1010
    %1012 = vmatmul.f32.gmra.mxu0 %v817
    %v1013 = vpop.f32.mrf.mxu0
    %v1014 = vadd.f32 0.0, %v1013
    %1015 = vmatmul.f32.gmra.mxu0 %v820
    %v1016 = vpop.f32.mrf.mxu0
    %v1017 = vadd.f32 0.0, %v1016
    %1018 = vmatmul.f32.gmra.mxu0 %v823
    %v1019 = vpop.f32.mrf.mxu0
    %v1020 = vadd.f32 0.0, %v1019
    %1021 = vmatmul.f32.gmra.mxu0 %v826
    %v1022 = vpop.f32.mrf.mxu0
    %v1023 = vadd.f32 0.0, %v1022
    %1024 = vmatmul.f32.gmra.mxu0 %v829
    %v1025 = vpop.f32.mrf.mxu0
    %v1026 = vadd.f32 0.0, %v1025
    %1027 = vmatmul.f32.gmra.mxu0 %v832
    %v1028 = vpop.f32.mrf.mxu0
    %v1029 = vadd.f32 0.0, %v1028
    %1030 = vmatmul.f32.gmra.mxu0 %v835
    %v1031 = vpop.f32.mrf.mxu0
    %v1032 = vadd.f32 0.0, %v1031
    %1033 = vmatmul.f32.gmra.mxu0 %v838
    %v1034 = vpop.f32.mrf.mxu0
    %v1035 = vadd.f32 0.0, %v1034
    %1036 = vmatmul.f32.gmra.mxu0 %v841
    %v1037 = vpop.f32.mrf.mxu0
    %v1038 = vadd.f32 0.0, %v1037
    %1039 = vmatmul.f32.gmra.mxu0 %v844
    %v1040 = vpop.f32.mrf.mxu0
    %v1041 = vadd.f32 0.0, %v1040
    %1042 = vmatmul.f32.gmra.mxu0 %v847
    %v1043 = vpop.f32.mrf.mxu0
    %v1044 = vadd.f32 0.0, %v1043
    %1045 = vmatmul.f32.gmra.mxu0 %v850
    %v1046 = vpop.f32.mrf.mxu0
    %v1047 = vadd.f32 0.0, %v1046
    %1048 = vmatmul.f32.gmra.mxu0 %v853
    %v1049 = vpop.f32.mrf.mxu0
    %v1050 = vadd.f32 0.0, %v1049
    %1051 = vmatmul.f32.gmra.mxu0 %v856
    %v1052 = vpop.f32.mrf.mxu0
    %v1053 = vadd.f32 0.0, %v1052
    %1054 = vmatmul.f32.gmra.mxu0 %v859
    %v1055 = vpop.f32.mrf.mxu0
    %v1056 = vadd.f32 0.0, %v1055
    %1057 = vmatmul.f32.gmra.mxu0 %v862
    %v1058 = vpop.f32.mrf.mxu0
    %v1059 = vadd.f32 0.0, %v1058
    %1060 = vmatmul.f32.gmra.mxu0 %v865
    %v1061 = vpop.f32.mrf.mxu0
    %v1062 = vadd.f32 0.0, %v1061
    %1063 = vmatmul.f32.gmra.mxu0 %v868
    %v1064 = vpop.f32.mrf.mxu0
    %v1065 = vadd.f32 0.0, %v1064
    %1066 = vmatmul.f32.gmra.mxu0 %v871
    %v1067 = vpop.f32.mrf.mxu0
    %v1068 = vadd.f32 0.0, %v1067
    %1069 = vmatmul.f32.gmra.mxu0 %v874
    %v1070 = vpop.f32.mrf.mxu0
    %v1071 = vadd.f32 0.0, %v1070
    %1072 = vmatmul.f32.gmra.mxu0 %v877
    %v1073 = vpop.f32.mrf.mxu0
    %v1074 = vadd.f32 0.0, %v1073
    %1075 = vmatmul.f32.gmra.mxu0 %v880
    %v1076 = vpop.f32.mrf.mxu0
    %v1077 = vadd.f32 0.0, %v1076
    %1078 = vmatmul.f32.gmra.mxu0 %v883
    %v1079 = vpop.f32.mrf.mxu0
    %v1080 = vadd.f32 0.0, %v1079
    %1081 = vmatmul.f32.gmra.mxu0 %v886
    %v1082 = vpop.f32.mrf.mxu0
    %v1083 = vadd.f32 0.0, %v1082
    %1084 = vmatmul.f32.gmra.mxu0 %v889
    %v1085 = vpop.f32.mrf.mxu0
    %v1086 = vadd.f32 0.0, %v1085
    %1087 = vmatmul.f32.gmra.mxu0 %v892
    %v1088 = vpop.f32.mrf.mxu0
    %v1089 = vadd.f32 0.0, %v1088
    %1090 = vmatmul.f32.gmra.mxu0 %v895
    %v1091 = vpop.f32.mrf.mxu0
    %v1092 = vadd.f32 0.0, %v1091
    %1093 = vmatmul.f32.gmra.mxu0 %v898
    %v1094 = vpop.f32.mrf.mxu0
    %v1095 = vadd.f32 0.0, %v1094
    %1096 = vmatmul.f32.gmra.mxu0 %v901
    %v1097 = vpop.f32.mrf.mxu0
    %v1098 = vadd.f32 0.0, %v1097
    %1099 = vmatmul.f32.gmra.mxu0 %v904
    %v1100 = vpop.f32.mrf.mxu0
    %v1101 = vadd.f32 0.0, %v1100
    %1102 = vmatmul.f32.gmra.mxu0 %v907
    %v1103 = vpop.f32.mrf.mxu0
    %v1104 = vadd.f32 0.0, %v1103
    %1105 = vmatmul.f32.gmra.mxu0 %v910
    %v1106 = vpop.f32.mrf.mxu0
    %v1107 = vadd.f32 0.0, %v1106
    %1108 = vmatmul.f32.gmra.mxu0 %v913
    %v1109 = vpop.f32.mrf.mxu0
    %v1110 = vadd.f32 0.0, %v1109
    %1111 = vmatmul.f32.gmra.mxu0 %v916
    %v1112 = vpop.f32.mrf.mxu0
    %v1113 = vadd.f32 0.0, %v1112
    %1114 = vmatmul.f32.gmra.mxu0 %v919
    %v1115 = vpop.f32.mrf.mxu0
    %v1116 = vadd.f32 0.0, %v1115
    %1117 = vmatmul.f32.gmra.mxu0 %v922
    %v1118 = vpop.f32.mrf.mxu0
    %v1119 = vadd.f32 0.0, %v1118
    %1120 = vmatmul.f32.gmra.mxu0 %v925
    %v1121 = vpop.f32.mrf.mxu0
    %v1122 = vadd.f32 0.0, %v1121
    %1123 = vmatmul.f32.gmra.mxu0 %v928
    %v1124 = vpop.f32.mrf.mxu0
    %v1125 = vadd.f32 0.0, %v1124
    %1126 = vmatmul.f32.gmra.mxu0 %v931
    %v1127 = vpop.f32.mrf.mxu0
    %v1128 = vadd.f32 0.0, %v1127
    %1129 = vmatmul.f32.gmra.mxu0 %v934
    %v1130 = vpop.f32.mrf.mxu0
    %v1131 = vadd.f32 0.0, %v1130
    %1132 = vmatmul.f32.gmra.mxu0 %v937
    %v1133 = vpop.f32.mrf.mxu0
    %v1134 = vadd.f32 0.0, %v1133
    %1135 = vmatmul.f32.gmra.mxu0 %v940
    %v1136 = vpop.f32.mrf.mxu0
    %v1137 = vadd.f32 0.0, %v1136
    %1138 = vmatmul.f32.gmra.mxu0 %v943
    %v1139 = vpop.f32.mrf.mxu0
    %v1140 = vadd.f32 0.0, %v1139
    %1141 = vmatmul.f32.gmra.mxu0 %v946
    %v1142 = vpop.f32.mrf.mxu0
    %v1143 = vadd.f32 0.0, %v1142
    %1144 = vmatmul.f32.gmra.mxu0 %v949
    %v1145 = vpop.f32.mrf.mxu0
    %v1146 = vadd.f32 0.0, %v1145
    %1147 = vmatmul.f32.gmra.mxu0 %v952
    %v1148 = vpop.f32.mrf.mxu0
    %v1149 = vadd.f32 0.0, %v1148
    %1150 = vmatmul.f32.gmra.mxu0 %v955
    %v1151 = vpop.f32.mrf.mxu0
    %v1152 = vadd.f32 0.0, %v1151
    %1153 = vmatmul.f32.gmra.mxu0 %v958
    %v1154 = vpop.f32.mrf.mxu0
    %v1155 = vadd.f32 0.0, %v1154
    %1156 = vmatmul.f32.gmra.mxu0 %v961
    %v1157 = vpop.f32.mrf.mxu0
    %v1158 = vadd.f32 0.0, %v1157
    %1159 = vmatmul.f32.gmra.mxu0 %v964
    %v1160 = vpop.f32.mrf.mxu0
    %v1161 = vadd.f32 0.0, %v1160
    %1162 = vmatmul.f32.gmra.mxu0 %v967
    %v1163 = vpop.f32.mrf.mxu0
    %v1164 = vadd.f32 0.0, %v1163
    %1165 = vmatmul.f32.gmra.mxu0 %v970
    %v1166 = vpop.f32.mrf.mxu0
    %v1167 = vadd.f32 0.0, %v1166
    %1168 = vmatmul.f32.gmra.mxu0 %v973
    %v1169 = vpop.f32.mrf.mxu0
    %v1170 = vadd.f32 0.0, %v1169
    %1171 = vdwg.mxu0
    %vm1172 = vcmask 785408
    %1173 = vst.msk [vmem:[#allocation3] sm:$0xff] %vm1172, %v993
    %1174 = vst.msk [vmem:[#allocation3 + $0x8] sm:$0xff] %vm1172, %v996
    %1175 = vst.msk [vmem:[#allocation3 + $0x10] sm:$0xff] %vm1172, %v999
    %1176 = vst.msk [vmem:[#allocation3 + $0x18] sm:$0xff] %vm1172, %v1002
    %1177 = vst.msk [vmem:[#allocation3 + $0x20] sm:$0xff] %vm1172, %v1005
    %1178 = vst.msk [vmem:[#allocation3 + $0x28] sm:$0xff] %vm1172, %v1008
    %1179 = vst.msk [vmem:[#allocation3 + $0x30] sm:$0xff] %vm1172, %v1011
    %1180 = vst.msk [vmem:[#allocation3 + $0x38] sm:$0xff] %vm1172, %v1014
    %1181 = vst.msk [vmem:[#allocation3 + $0x40] sm:$0xff] %vm1172, %v1017
    %1182 = vst.msk [vmem:[#allocation3 + $0x48] sm:$0xff] %vm1172, %v1020
    %1183 = vst.msk [vmem:[#allocation3 + $0x50] sm:$0xff] %vm1172, %v1023
    %1184 = vst.msk [vmem:[#allocation3 + $0x58] sm:$0xff] %vm1172, %v1026
    %1185 = vst.msk [vmem:[#allocation3 + $0x60] sm:$0xff] %vm1172, %v1029
    %1186 = vst.msk [vmem:[#allocation3 + $0x68] sm:$0xff] %vm1172, %v1032
    %1187 = vst.msk [vmem:[#allocation3 + $0x70] sm:$0xff] %vm1172, %v1035
    %1188 = vst.msk [vmem:[#allocation3 + $0x78] sm:$0xff] %vm1172, %v1038
    %1189 = vst.msk [vmem:[#allocation3 + $0x80] sm:$0xff] %vm1172, %v1041
    %1190 = vst.msk [vmem:[#allocation3 + $0x88] sm:$0xff] %vm1172, %v1044
    %1191 = vst.msk [vmem:[#allocation3 + $0x90] sm:$0xff] %vm1172, %v1047
    %1192 = vst.msk [vmem:[#allocation3 + $0x98] sm:$0xff] %vm1172, %v1050
    %1193 = vst.msk [vmem:[#allocation3 + $0xa0] sm:$0xff] %vm1172, %v1053
    %1194 = vst.msk [vmem:[#allocation3 + $0xa8] sm:$0xff] %vm1172, %v1056
    %1195 = vst.msk [vmem:[#allocation3 + $0xb0] sm:$0xff] %vm1172, %v1059
    %1196 = vst.msk [vmem:[#allocation3 + $0xb8] sm:$0xff] %vm1172, %v1062
    %1197 = vst.msk [vmem:[#allocation3 + $0xc0] sm:$0xff] %vm1172, %v1065
    %1198 = vst.msk [vmem:[#allocation3 + $0xc8] sm:$0xff] %vm1172, %v1068
    %1199 = vst.msk [vmem:[#allocation3 + $0xd0] sm:$0xff] %vm1172, %v1071
    %1200 = vst.msk [vmem:[#allocation3 + $0xd8] sm:$0xff] %vm1172, %v1074
    %1201 = vst.msk [vmem:[#allocation3 + $0xe0] sm:$0xff] %vm1172, %v1077
    %1202 = vst.msk [vmem:[#allocation3 + $0xe8] sm:$0xff] %vm1172, %v1080
    %1203 = vst.msk [vmem:[#allocation3 + $0xf0] sm:$0xff] %vm1172, %v1083
    %1204 = vst.msk [vmem:[#allocation3 + $0xf8] sm:$0xff] %vm1172, %v1086
    %1205 = vst.msk [vmem:[#allocation3 + $0x100] sm:$0xff] %vm1172, %v1089
    %1206 = vst.msk [vmem:[#allocation3 + $0x108] sm:$0xff] %vm1172, %v1092
    %1207 = vst.msk [vmem:[#allocation3 + $0x110] sm:$0xff] %vm1172, %v1095
    %1208 = vst.msk [vmem:[#allocation3 + $0x118] sm:$0xff] %vm1172, %v1098
    %1209 = vst.msk [vmem:[#allocation3 + $0x120] sm:$0xff] %vm1172, %v1101
    %1210 = vst.msk [vmem:[#allocation3 + $0x128] sm:$0xff] %vm1172, %v1104
    %1211 = vst.msk [vmem:[#allocation3 + $0x130] sm:$0xff] %vm1172, %v1107
    %1212 = vst.msk [vmem:[#allocation3 + $0x138] sm:$0xff] %vm1172, %v1110
    %1213 = vst.msk [vmem:[#allocation3 + $0x140] sm:$0xff] %vm1172, %v1113
    %1214 = vst.msk [vmem:[#allocation3 + $0x148] sm:$0xff] %vm1172, %v1116
    %1215 = vst.msk [vmem:[#allocation3 + $0x150] sm:$0xff] %vm1172, %v1119
    %1216 = vst.msk [vmem:[#allocation3 + $0x158] sm:$0xff] %vm1172, %v1122
    %1217 = vst.msk [vmem:[#allocation3 + $0x160] sm:$0xff] %vm1172, %v1125
    %1218 = vst.msk [vmem:[#allocation3 + $0x168] sm:$0xff] %vm1172, %v1128
    %1219 = vst.msk [vmem:[#allocation3 + $0x170] sm:$0xff] %vm1172, %v1131
    %1220 = vst.msk [vmem:[#allocation3 + $0x178] sm:$0xff] %vm1172, %v1134
    %1221 = vst.msk [vmem:[#allocation3 + $0x180] sm:$0xff] %vm1172, %v1137
    %1222 = vst.msk [vmem:[#allocation3 + $0x188] sm:$0xff] %vm1172, %v1140
    %1223 = vst.msk [vmem:[#allocation3 + $0x190] sm:$0xff] %vm1172, %v1143
    %1224 = vst.msk [vmem:[#allocation3 + $0x198] sm:$0xff] %vm1172, %v1146
    %1225 = vst.msk [vmem:[#allocation3 + $0x1a0] sm:$0xff] %vm1172, %v1149
    %1226 = vst.msk [vmem:[#allocation3 + $0x1a8] sm:$0xff] %vm1172, %v1152
    %1227 = vst.msk [vmem:[#allocation3 + $0x1b0] sm:$0xff] %vm1172, %v1155
    %1228 = vst.msk [vmem:[#allocation3 + $0x1b8] sm:$0xff] %vm1172, %v1158
    %1229 = vst.msk [vmem:[#allocation3 + $0x1c0] sm:$0xff] %vm1172, %v1161
    %1230 = vst.msk [vmem:[#allocation3 + $0x1c8] sm:$0xff] %vm1172, %v1164
    %1231 = vst.msk [vmem:[#allocation3 + $0x1d0] sm:$0xff] %vm1172, %v1167
    %1232 = vst.msk [vmem:[#allocation3 + $0x1d8] sm:$0xff] %vm1172, %v1170
    %v1233 = vld [vmem:[#allocation3] sm:$0xff]
    %v1234 = vld [vmem:[#allocation3 + $0x8] sm:$0xff]
    %v1235 = vld [vmem:[#allocation3 + $0x10] sm:$0xff]
    %v1236 = vld [vmem:[#allocation3 + $0x18] sm:$0xff]
    %v1237 = vld [vmem:[#allocation3 + $0x20] sm:$0xff]
    %v1238 = vld [vmem:[#allocation3 + $0x28] sm:$0xff]
    %v1239 = vld [vmem:[#allocation3 + $0x30] sm:$0xff]
    %v1240 = vld [vmem:[#allocation3 + $0x38] sm:$0xff]
    %v1241 = vld [vmem:[#allocation3 + $0x40] sm:$0xff]
    %v1242 = vld [vmem:[#allocation3 + $0x48] sm:$0xff]
    %v1243 = vld [vmem:[#allocation3 + $0x50] sm:$0xff]
    %v1244 = vld [vmem:[#allocation3 + $0x58] sm:$0xff]
    %v1245 = vld [vmem:[%s6] sm:$0xff]
    %v1246 = vld [vmem:[%s6 + $0x8] sm:$0xff]
    %v1247 = vld [vmem:[%s6 + $0x10] sm:$0xff]
    %v1248 = vld [vmem:[%s6 + $0x18] sm:$0xff]
    %v1249 = vld [vmem:[%s6 + $0x20] sm:$0xff]
    %v1250 = vld [vmem:[%s6 + $0x28] sm:$0xff]
    %v1251 = vld [vmem:[%s6 + $0x30] sm:$0xff]
    %v1252 = vld [vmem:[%s6 + $0x38] sm:$0xff]
    %v1253 = vld [vmem:[%s6 + $0x40] sm:$0xff]
    %v1254 = vld [vmem:[%s6 + $0x48] sm:$0xff]
    %v1255 = vld [vmem:[%s6 + $0x50] sm:$0xff]
    %v1256 = vld [vmem:[%s6 + $0x58] sm:$0xff]
    %v1257 = vld [vmem:[%s6 + $0x60] sm:$0xff]
    %v1258 = vld [vmem:[%s6 + $0x68] sm:$0xff]
    %v1259 = vld [vmem:[%s6 + $0x70] sm:$0xff]
    %v1260 = vld [vmem:[%s6 + $0x78] sm:$0xff]
    %v1261 = vld [vmem:[%s6 + $0x80] sm:$0xff]
    %v1262 = vld [vmem:[%s6 + $0x88] sm:$0xff]
    %v1263 = vld [vmem:[%s6 + $0x90] sm:$0xff]
    %v1264 = vld [vmem:[%s6 + $0x98] sm:$0xff]
    %v1265 = vld [vmem:[%s6 + $0xa0] sm:$0xff]
    %v1266 = vld [vmem:[%s6 + $0xa8] sm:$0xff]
    %v1267 = vld [vmem:[%s6 + $0xb0] sm:$0xff]
    %v1268 = vld [vmem:[%s6 + $0xb8] sm:$0xff]
    %v1269 = vld [vmem:[%s6 + $0xc0] sm:$0xff]
    %v1270 = vld [vmem:[%s6 + $0xc8] sm:$0xff]
    %v1271 = vld [vmem:[%s6 + $0xd0] sm:$0xff]
    %v1272 = vld [vmem:[%s6 + $0xd8] sm:$0xff]
    %v1273 = vld [vmem:[%s6 + $0xe0] sm:$0xff]
    %v1274 = vld [vmem:[%s6 + $0xe8] sm:$0xff]
    %v1275 = vld [vmem:[%s6 + $0xf0] sm:$0xff]
    %v1276 = vld [vmem:[%s6 + $0xf8] sm:$0xff]
    %v1277 = vld [vmem:[%s6 + $0x100] sm:$0xff]
    %v1278 = vld [vmem:[%s6 + $0x108] sm:$0xff]
    %v1279 = vld [vmem:[%s6 + $0x110] sm:$0xff]
    %v1280 = vld [vmem:[%s6 + $0x118] sm:$0xff]
    %v1281 = vld [vmem:[#allocation3 + $0x60] sm:$0xff]
    %v1282 = vld [vmem:[#allocation3 + $0x68] sm:$0xff]
    %v1283 = vld [vmem:[#allocation3 + $0x70] sm:$0xff]
    %v1284 = vld [vmem:[#allocation3 + $0x78] sm:$0xff]
    %v1285 = vld [vmem:[#allocation3 + $0x80] sm:$0xff]
    %v1286 = vld [vmem:[#allocation3 + $0x88] sm:$0xff]
    %v1287 = vld [vmem:[#allocation3 + $0x90] sm:$0xff]
    %v1288 = vld [vmem:[#allocation3 + $0x98] sm:$0xff]
    %v1289 = vld [vmem:[#allocation3 + $0xa0] sm:$0xff]
    %v1290 = vld [vmem:[#allocation3 + $0xa8] sm:$0xff]
    %v1291 = vld [vmem:[#allocation3 + $0xb0] sm:$0xff]
    %v1292 = vld [vmem:[#allocation3 + $0xb8] sm:$0xff]
    %v1293 = vld [vmem:[%s6 + $0x120] sm:$0xff]
    %v1294 = vld [vmem:[%s6 + $0x128] sm:$0xff]
    %v1295 = vld [vmem:[%s6 + $0x130] sm:$0xff]
    %v1296 = vld [vmem:[%s6 + $0x138] sm:$0xff]
    %v1297 = vld [vmem:[%s6 + $0x140] sm:$0xff]
    %v1298 = vld [vmem:[%s6 + $0x148] sm:$0xff]
    %v1299 = vld [vmem:[%s6 + $0x150] sm:$0xff]
    %v1300 = vld [vmem:[%s6 + $0x158] sm:$0xff]
    %v1301 = vld [vmem:[%s6 + $0x160] sm:$0xff]
    %v1302 = vld [vmem:[%s6 + $0x168] sm:$0xff]
    %v1303 = vld [vmem:[%s6 + $0x170] sm:$0xff]
    %v1304 = vld [vmem:[%s6 + $0x178] sm:$0xff]
    %v1305 = vld [vmem:[%s6 + $0x180] sm:$0xff]
    %v1306 = vld [vmem:[%s6 + $0x188] sm:$0xff]
    %v1307 = vld [vmem:[%s6 + $0x190] sm:$0xff]
    %v1308 = vld [vmem:[%s6 + $0x198] sm:$0xff]
    %v1309 = vld [vmem:[%s6 + $0x1a0] sm:$0xff]
    %v1310 = vld [vmem:[%s6 + $0x1a8] sm:$0xff]
    %v1311 = vld [vmem:[%s6 + $0x1b0] sm:$0xff]
    %v1312 = vld [vmem:[%s6 + $0x1b8] sm:$0xff]
    %v1313 = vld [vmem:[%s6 + $0x1c0] sm:$0xff]
    %v1314 = vld [vmem:[%s6 + $0x1c8] sm:$0xff]
    %v1315 = vld [vmem:[%s6 + $0x1d0] sm:$0xff]
    %v1316 = vld [vmem:[%s6 + $0x1d8] sm:$0xff]
    %v1317 = vld [vmem:[%s6 + $0x1e0] sm:$0xff]
    %v1318 = vld [vmem:[%s6 + $0x1e8] sm:$0xff]
    %v1319 = vld [vmem:[%s6 + $0x1f0] sm:$0xff]
    %v1320 = vld [vmem:[%s6 + $0x1f8] sm:$0xff]
    %v1321 = vld [vmem:[%s6 + $0x200] sm:$0xff]
    %v1322 = vld [vmem:[%s6 + $0x208] sm:$0xff]
    %v1323 = vld [vmem:[%s6 + $0x210] sm:$0xff]
    %v1324 = vld [vmem:[%s6 + $0x218] sm:$0xff]
    %v1325 = vld [vmem:[%s6 + $0x220] sm:$0xff]
    %v1326 = vld [vmem:[%s6 + $0x228] sm:$0xff]
    %v1327 = vld [vmem:[%s6 + $0x230] sm:$0xff]
    %v1328 = vld [vmem:[%s6 + $0x238] sm:$0xff]
    %v1330 = vsel %vm1172, %v1281, 0
    %v1333 = vsel %vm1172, %v1282, 0
    %v1336 = vsel %vm1172, %v1283, 0
    %v1339 = vsel %vm1172, %v1284, 0
    %v1342 = vsel %vm1172, %v1285, 0
    %v1345 = vsel %vm1172, %v1286, 0
    %v1348 = vsel %vm1172, %v1287, 0
    %v1351 = vsel %vm1172, %v1288, 0
    %v1354 = vsel %vm1172, %v1289, 0
    %v1357 = vsel %vm1172, %v1290, 0
    %v1360 = vsel %vm1172, %v1291, 0
    %v1363 = vsel %vm1172, %v1292, 0
    %1365 = vmatpush.msra.mxu0 0.0
    %1366 = vmatpush.msra.mxu0 0.0
    %1367 = vmatpush.msra.mxu0 0.0
    %1368 = vmatpush.msra.mxu0 0.0
    %1369 = vmatpush.msra.mxu0 %v1326
    %1370 = vmatpush.msra.mxu0 %v1323
    %1371 = vmatpush.msra.mxu0 %v1320
    %1372 = vmatpush.msra.mxu0 %v1317
    %1373 = vmatpush.msra.mxu0 %v1314
    %1374 = vmatpush.msra.mxu0 %v1311
    %1375 = vmatpush.msra.mxu0 %v1308
    %1376 = vmatpush.msra.mxu0 %v1305
    %1377 = vmatpush.msra.mxu0 %v1302
    %1378 = vmatpush.msra.mxu0 %v1299
    %1379 = vmatpush.msra.mxu0 %v1296
    %1380 = vmatpush.msra.mxu0 %v1293
    %1381 = vmatmul.f32.gmra.mxu0 %v1330
    %v1382 = vpop.f32.mrf.mxu0
    %v1383 = vadd.f32 0.0, %v1382
    %1384 = vmatmul.f32.gmra.mxu0 %v1333
    %v1385 = vpop.f32.mrf.mxu0
    %v1386 = vadd.f32 0.0, %v1385
    %1387 = vmatmul.f32.gmra.mxu0 %v1336
    %v1388 = vpop.f32.mrf.mxu0
    %v1389 = vadd.f32 0.0, %v1388
    %1390 = vmatmul.f32.gmra.mxu0 %v1339
    %v1391 = vpop.f32.mrf.mxu0
    %v1392 = vadd.f32 0.0, %v1391
    %1393 = vmatmul.f32.gmra.mxu0 %v1342
    %v1394 = vpop.f32.mrf.mxu0
    %v1395 = vadd.f32 0.0, %v1394
    %1396 = vmatmul.f32.gmra.mxu0 %v1345
    %v1397 = vpop.f32.mrf.mxu0
    %v1398 = vadd.f32 0.0, %v1397
    %1399 = vmatmul.f32.gmra.mxu0 %v1348
    %v1400 = vpop.f32.mrf.mxu0
    %v1401 = vadd.f32 0.0, %v1400
    %1402 = vmatmul.f32.gmra.mxu0 %v1351
    %v1403 = vpop.f32.mrf.mxu0
    %v1404 = vadd.f32 0.0, %v1403
    %1405 = vmatmul.f32.gmra.mxu0 %v1354
    %v1406 = vpop.f32.mrf.mxu0
    %v1407 = vadd.f32 0.0, %v1406
    %1408 = vmatmul.f32.gmra.mxu0 %v1357
    %v1409 = vpop.f32.mrf.mxu0
    %v1410 = vadd.f32 0.0, %v1409
    %1411 = vmatmul.f32.gmra.mxu0 %v1360
    %v1412 = vpop.f32.mrf.mxu0
    %v1413 = vadd.f32 0.0, %v1412
    %1414 = vmatmul.f32.gmra.mxu0 %v1363
    %v1415 = vpop.f32.mrf.mxu0
    %v1416 = vadd.f32 0.0, %v1415
    %1417 = vdwg.mxu0
    %1418 = vmatpush.msra.mxu0 0.0
    %1419 = vmatpush.msra.mxu0 0.0
    %1420 = vmatpush.msra.mxu0 0.0
    %1421 = vmatpush.msra.mxu0 0.0
    %1422 = vmatpush.msra.mxu0 %v1327
    %1423 = vmatpush.msra.mxu0 %v1324
    %1424 = vmatpush.msra.mxu0 %v1321
    %1425 = vmatpush.msra.mxu0 %v1318
    %1426 = vmatpush.msra.mxu0 %v1315
    %1427 = vmatpush.msra.mxu0 %v1312
    %1428 = vmatpush.msra.mxu0 %v1309
    %1429 = vmatpush.msra.mxu0 %v1306
    %1430 = vmatpush.msra.mxu0 %v1303
    %1431 = vmatpush.msra.mxu0 %v1300
    %1432 = vmatpush.msra.mxu0 %v1297
    %1433 = vmatpush.msra.mxu0 %v1294
    %1434 = vmatmul.f32.gmra.mxu0 %v1330
    %v1435 = vpop.f32.mrf.mxu0
    %v1436 = vadd.f32 0.0, %v1435
    %1437 = vmatmul.f32.gmra.mxu0 %v1333
    %v1438 = vpop.f32.mrf.mxu0
    %v1439 = vadd.f32 0.0, %v1438
    %1440 = vmatmul.f32.gmra.mxu0 %v1336
    %v1441 = vpop.f32.mrf.mxu0
    %v1442 = vadd.f32 0.0, %v1441
    %1443 = vmatmul.f32.gmra.mxu0 %v1339
    %v1444 = vpop.f32.mrf.mxu0
    %v1445 = vadd.f32 0.0, %v1444
    %1446 = vmatmul.f32.gmra.mxu0 %v1342
    %v1447 = vpop.f32.mrf.mxu0
    %v1448 = vadd.f32 0.0, %v1447
    %1449 = vmatmul.f32.gmra.mxu0 %v1345
    %v1450 = vpop.f32.mrf.mxu0
    %v1451 = vadd.f32 0.0, %v1450
    %1452 = vmatmul.f32.gmra.mxu0 %v1348
    %v1453 = vpop.f32.mrf.mxu0
    %v1454 = vadd.f32 0.0, %v1453
    %1455 = vmatmul.f32.gmra.mxu0 %v1351
    %v1456 = vpop.f32.mrf.mxu0
    %v1457 = vadd.f32 0.0, %v1456
    %1458 = vmatmul.f32.gmra.mxu0 %v1354
    %v1459 = vpop.f32.mrf.mxu0
    %v1460 = vadd.f32 0.0, %v1459
    %1461 = vmatmul.f32.gmra.mxu0 %v1357
    %v1462 = vpop.f32.mrf.mxu0
    %v1463 = vadd.f32 0.0, %v1462
    %1464 = vmatmul.f32.gmra.mxu0 %v1360
    %v1465 = vpop.f32.mrf.mxu0
    %v1466 = vadd.f32 0.0, %v1465
    %1467 = vmatmul.f32.gmra.mxu0 %v1363
    %v1468 = vpop.f32.mrf.mxu0
    %v1469 = vadd.f32 0.0, %v1468
    %1470 = vdwg.mxu0
    %1471 = vmatpush.msra.mxu0 0.0
    %1472 = vmatpush.msra.mxu0 0.0
    %1473 = vmatpush.msra.mxu0 0.0
    %1474 = vmatpush.msra.mxu0 0.0
    %1475 = vmatpush.msra.mxu0 %v1328
    %1476 = vmatpush.msra.mxu0 %v1325
    %1477 = vmatpush.msra.mxu0 %v1322
    %1478 = vmatpush.msra.mxu0 %v1319
    %1479 = vmatpush.msra.mxu0 %v1316
    %1480 = vmatpush.msra.mxu0 %v1313
    %1481 = vmatpush.msra.mxu0 %v1310
    %1482 = vmatpush.msra.mxu0 %v1307
    %1483 = vmatpush.msra.mxu0 %v1304
    %1484 = vmatpush.msra.mxu0 %v1301
    %1485 = vmatpush.msra.mxu0 %v1298
    %1486 = vmatpush.msra.mxu0 %v1295
    %1487 = vmatmul.f32.gmra.mxu0 %v1330
    %v1488 = vpop.f32.mrf.mxu0
    %v1489 = vadd.f32 0.0, %v1488
    %1490 = vmatmul.f32.gmra.mxu0 %v1333
    %v1491 = vpop.f32.mrf.mxu0
    %v1492 = vadd.f32 0.0, %v1491
    %1493 = vmatmul.f32.gmra.mxu0 %v1336
    %v1494 = vpop.f32.mrf.mxu0
    %v1495 = vadd.f32 0.0, %v1494
    %1496 = vmatmul.f32.gmra.mxu0 %v1339
    %v1497 = vpop.f32.mrf.mxu0
    %v1498 = vadd.f32 0.0, %v1497
    %1499 = vmatmul.f32.gmra.mxu0 %v1342
    %v1500 = vpop.f32.mrf.mxu0
    %v1501 = vadd.f32 0.0, %v1500
    %1502 = vmatmul.f32.gmra.mxu0 %v1345
    %v1503 = vpop.f32.mrf.mxu0
    %v1504 = vadd.f32 0.0, %v1503
    %1505 = vmatmul.f32.gmra.mxu0 %v1348
    %v1506 = vpop.f32.mrf.mxu0
    %v1507 = vadd.f32 0.0, %v1506
    %1508 = vmatmul.f32.gmra.mxu0 %v1351
    %v1509 = vpop.f32.mrf.mxu0
    %v1510 = vadd.f32 0.0, %v1509
    %1511 = vmatmul.f32.gmra.mxu0 %v1354
    %v1512 = vpop.f32.mrf.mxu0
    %v1513 = vadd.f32 0.0, %v1512
    %1514 = vmatmul.f32.gmra.mxu0 %v1357
    %v1515 = vpop.f32.mrf.mxu0
    %v1516 = vadd.f32 0.0, %v1515
    %1517 = vmatmul.f32.gmra.mxu0 %v1360
    %v1518 = vpop.f32.mrf.mxu0
    %v1519 = vadd.f32 0.0, %v1518
    %1520 = vmatmul.f32.gmra.mxu0 %v1363
    %v1521 = vpop.f32.mrf.mxu0
    %v1522 = vadd.f32 0.0, %v1521
    %1523 = vdwg.mxu0
    %v1525 = vsel %vm1172, %v1233, 0
    %v1528 = vsel %vm1172, %v1234, 0
    %v1531 = vsel %vm1172, %v1235, 0
    %v1534 = vsel %vm1172, %v1236, 0
    %v1537 = vsel %vm1172, %v1237, 0
    %v1540 = vsel %vm1172, %v1238, 0
    %v1543 = vsel %vm1172, %v1239, 0
    %v1546 = vsel %vm1172, %v1240, 0
    %v1549 = vsel %vm1172, %v1241, 0
    %v1552 = vsel %vm1172, %v1242, 0
    %v1555 = vsel %vm1172, %v1243, 0
    %v1558 = vsel %vm1172, %v1244, 0
    %1560 = vmatpush.msra.mxu0 0.0
    %1561 = vmatpush.msra.mxu0 0.0
    %1562 = vmatpush.msra.mxu0 0.0
    %1563 = vmatpush.msra.mxu0 0.0
    %1564 = vmatpush.msra.mxu0 %v1278
    %1565 = vmatpush.msra.mxu0 %v1275
    %1566 = vmatpush.msra.mxu0 %v1272
    %1567 = vmatpush.msra.mxu0 %v1269
    %1568 = vmatpush.msra.mxu0 %v1266
    %1569 = vmatpush.msra.mxu0 %v1263
    %1570 = vmatpush.msra.mxu0 %v1260
    %1571 = vmatpush.msra.mxu0 %v1257
    %1572 = vmatpush.msra.mxu0 %v1254
    %1573 = vmatpush.msra.mxu0 %v1251
    %1574 = vmatpush.msra.mxu0 %v1248
    %1575 = vmatpush.msra.mxu0 %v1245
    %1576 = vmatmul.f32.gmra.mxu0 %v1525
    %v1577 = vpop.f32.mrf.mxu0
    %v1578 = vadd.f32 %v1383, %v1577
    %1579 = vmatmul.f32.gmra.mxu0 %v1528
    %v1580 = vpop.f32.mrf.mxu0
    %v1581 = vadd.f32 %v1386, %v1580
    %1582 = vmatmul.f32.gmra.mxu0 %v1531
    %v1583 = vpop.f32.mrf.mxu0
    %v1584 = vadd.f32 %v1389, %v1583
    %1585 = vmatmul.f32.gmra.mxu0 %v1534
    %v1586 = vpop.f32.mrf.mxu0
    %v1587 = vadd.f32 %v1392, %v1586
    %1588 = vmatmul.f32.gmra.mxu0 %v1537
    %v1589 = vpop.f32.mrf.mxu0
    %v1590 = vadd.f32 %v1395, %v1589
    %1591 = vmatmul.f32.gmra.mxu0 %v1540
    %v1592 = vpop.f32.mrf.mxu0
    %v1593 = vadd.f32 %v1398, %v1592
    %1594 = vmatmul.f32.gmra.mxu0 %v1543
    %v1595 = vpop.f32.mrf.mxu0
    %v1596 = vadd.f32 %v1401, %v1595
    %1597 = vmatmul.f32.gmra.mxu0 %v1546
    %v1598 = vpop.f32.mrf.mxu0
    %v1599 = vadd.f32 %v1404, %v1598
    %1600 = vmatmul.f32.gmra.mxu0 %v1549
    %v1601 = vpop.f32.mrf.mxu0
    %v1602 = vadd.f32 %v1407, %v1601
    %1603 = vmatmul.f32.gmra.mxu0 %v1552
    %v1604 = vpop.f32.mrf.mxu0
    %v1605 = vadd.f32 %v1410, %v1604
    %1606 = vmatmul.f32.gmra.mxu0 %v1555
    %v1607 = vpop.f32.mrf.mxu0
    %v1608 = vadd.f32 %v1413, %v1607
    %1609 = vmatmul.f32.gmra.mxu0 %v1558
    %v1610 = vpop.f32.mrf.mxu0
    %v1611 = vadd.f32 %v1416, %v1610
    %1612 = vdwg.mxu0
    %1613 = vmatpush.msra.mxu0 0.0
    %1614 = vmatpush.msra.mxu0 0.0
    %1615 = vmatpush.msra.mxu0 0.0
    %1616 = vmatpush.msra.mxu0 0.0
    %1617 = vmatpush.msra.mxu0 %v1279
    %1618 = vmatpush.msra.mxu0 %v1276
    %1619 = vmatpush.msra.mxu0 %v1273
    %1620 = vmatpush.msra.mxu0 %v1270
    %1621 = vmatpush.msra.mxu0 %v1267
    %1622 = vmatpush.msra.mxu0 %v1264
    %1623 = vmatpush.msra.mxu0 %v1261
    %1624 = vmatpush.msra.mxu0 %v1258
    %1625 = vmatpush.msra.mxu0 %v1255
    %1626 = vmatpush.msra.mxu0 %v1252
    %1627 = vmatpush.msra.mxu0 %v1249
    %1628 = vmatpush.msra.mxu0 %v1246
    %1629 = vmatmul.f32.gmra.mxu0 %v1525
    %v1630 = vpop.f32.mrf.mxu0
    %v1631 = vadd.f32 %v1436, %v1630
    %1632 = vmatmul.f32.gmra.mxu0 %v1528
    %v1633 = vpop.f32.mrf.mxu0
    %v1634 = vadd.f32 %v1439, %v1633
    %1635 = vmatmul.f32.gmra.mxu0 %v1531
    %v1636 = vpop.f32.mrf.mxu0
    %v1637 = vadd.f32 %v1442, %v1636
    %1638 = vmatmul.f32.gmra.mxu0 %v1534
    %v1639 = vpop.f32.mrf.mxu0
    %v1640 = vadd.f32 %v1445, %v1639
    %1641 = vmatmul.f32.gmra.mxu0 %v1537
    %v1642 = vpop.f32.mrf.mxu0
    %v1643 = vadd.f32 %v1448, %v1642
    %1644 = vmatmul.f32.gmra.mxu0 %v1540
    %v1645 = vpop.f32.mrf.mxu0
    %v1646 = vadd.f32 %v1451, %v1645
    %1647 = vmatmul.f32.gmra.mxu0 %v1543
    %v1648 = vpop.f32.mrf.mxu0
    %v1649 = vadd.f32 %v1454, %v1648
    %1650 = vmatmul.f32.gmra.mxu0 %v1546
    %v1651 = vpop.f32.mrf.mxu0
    %v1652 = vadd.f32 %v1457, %v1651
    %1653 = vmatmul.f32.gmra.mxu0 %v1549
    %v1654 = vpop.f32.mrf.mxu0
    %v1655 = vadd.f32 %v1460, %v1654
    %1656 = vmatmul.f32.gmra.mxu0 %v1552
    %v1657 = vpop.f32.mrf.mxu0
    %v1658 = vadd.f32 %v1463, %v1657
    %1659 = vmatmul.f32.gmra.mxu0 %v1555
    %v1660 = vpop.f32.mrf.mxu0
    %v1661 = vadd.f32 %v1466, %v1660
    %1662 = vmatmul.f32.gmra.mxu0 %v1558
    %v1663 = vpop.f32.mrf.mxu0
    %v1664 = vadd.f32 %v1469, %v1663
    %1665 = vdwg.mxu0
    %1666 = vmatpush.msra.mxu0 0.0
    %1667 = vmatpush.msra.mxu0 0.0
    %1668 = vmatpush.msra.mxu0 0.0
    %1669 = vmatpush.msra.mxu0 0.0
    %1670 = vmatpush.msra.mxu0 %v1280
    %1671 = vmatpush.msra.mxu0 %v1277
    %1672 = vmatpush.msra.mxu0 %v1274
    %1673 = vmatpush.msra.mxu0 %v1271
    %1674 = vmatpush.msra.mxu0 %v1268
    %1675 = vmatpush.msra.mxu0 %v1265
    %1676 = vmatpush.msra.mxu0 %v1262
    %1677 = vmatpush.msra.mxu0 %v1259
    %1678 = vmatpush.msra.mxu0 %v1256
    %1679 = vmatpush.msra.mxu0 %v1253
    %1680 = vmatpush.msra.mxu0 %v1250
    %1681 = vmatpush.msra.mxu0 %v1247
    %1682 = vmatmul.f32.gmra.mxu0 %v1525
    %v1683 = vpop.f32.mrf.mxu0
    %v1684 = vadd.f32 %v1489, %v1683
    %1685 = vmatmul.f32.gmra.mxu0 %v1528
    %v1686 = vpop.f32.mrf.mxu0
    %v1687 = vadd.f32 %v1492, %v1686
    %1688 = vmatmul.f32.gmra.mxu0 %v1531
    %v1689 = vpop.f32.mrf.mxu0
    %v1690 = vadd.f32 %v1495, %v1689
    %1691 = vmatmul.f32.gmra.mxu0 %v1534
    %v1692 = vpop.f32.mrf.mxu0
    %v1693 = vadd.f32 %v1498, %v1692
    %1694 = vmatmul.f32.gmra.mxu0 %v1537
    %v1695 = vpop.f32.mrf.mxu0
    %v1696 = vadd.f32 %v1501, %v1695
    %1697 = vmatmul.f32.gmra.mxu0 %v1540
    %v1698 = vpop.f32.mrf.mxu0
    %v1699 = vadd.f32 %v1504, %v1698
    %1700 = vmatmul.f32.gmra.mxu0 %v1543
    %v1701 = vpop.f32.mrf.mxu0
    %v1702 = vadd.f32 %v1507, %v1701
    %1703 = vmatmul.f32.gmra.mxu0 %v1546
    %v1704 = vpop.f32.mrf.mxu0
    %v1705 = vadd.f32 %v1510, %v1704
    %1706 = vmatmul.f32.gmra.mxu0 %v1549
    %v1707 = vpop.f32.mrf.mxu0
    %v1708 = vadd.f32 %v1513, %v1707
    %1709 = vmatmul.f32.gmra.mxu0 %v1552
    %v1710 = vpop.f32.mrf.mxu0
    %v1711 = vadd.f32 %v1516, %v1710
    %1712 = vmatmul.f32.gmra.mxu0 %v1555
    %v1713 = vpop.f32.mrf.mxu0
    %v1714 = vadd.f32 %v1519, %v1713
    %1715 = vmatmul.f32.gmra.mxu0 %v1558
    %v1716 = vpop.f32.mrf.mxu0
    %v1717 = vadd.f32 %v1522, %v1716
    %1718 = vdwg.mxu0
    %v1719 = vld [vmem:[#allocation3 + $0xc0] sm:$0xff]
    %v1720 = vld [vmem:[#allocation3 + $0xc8] sm:$0xff]
    %v1721 = vld [vmem:[#allocation3 + $0xd0] sm:$0xff]
    %v1722 = vld [vmem:[#allocation3 + $0xd8] sm:$0xff]
    %v1723 = vld [vmem:[#allocation3 + $0xe0] sm:$0xff]
    %v1724 = vld [vmem:[#allocation3 + $0xe8] sm:$0xff]
    %v1725 = vld [vmem:[#allocation3 + $0xf0] sm:$0xff]
    %v1726 = vld [vmem:[#allocation3 + $0xf8] sm:$0xff]
    %v1727 = vld [vmem:[#allocation3 + $0x100] sm:$0xff]
    %v1728 = vld [vmem:[#allocation3 + $0x108] sm:$0xff]
    %v1729 = vld [vmem:[#allocation3 + $0x110] sm:$0xff]
    %v1730 = vld [vmem:[#allocation3 + $0x118] sm:$0xff]
    %v1731 = vld [vmem:[%s6 + $0x240] sm:$0xff]
    %v1732 = vld [vmem:[%s6 + $0x248] sm:$0xff]
    %v1733 = vld [vmem:[%s6 + $0x250] sm:$0xff]
    %v1734 = vld [vmem:[%s6 + $0x258] sm:$0xff]
    %v1735 = vld [vmem:[%s6 + $0x260] sm:$0xff]
    %v1736 = vld [vmem:[%s6 + $0x268] sm:$0xff]
    %v1737 = vld [vmem:[%s6 + $0x270] sm:$0xff]
    %v1738 = vld [vmem:[%s6 + $0x278] sm:$0xff]
    %v1739 = vld [vmem:[%s6 + $0x280] sm:$0xff]
    %v1740 = vld [vmem:[%s6 + $0x288] sm:$0xff]
    %v1741 = vld [vmem:[%s6 + $0x290] sm:$0xff]
    %v1742 = vld [vmem:[%s6 + $0x298] sm:$0xff]
    %v1743 = vld [vmem:[%s6 + $0x2a0] sm:$0xff]
    %v1744 = vld [vmem:[%s6 + $0x2a8] sm:$0xff]
    %v1745 = vld [vmem:[%s6 + $0x2b0] sm:$0xff]
    %v1746 = vld [vmem:[%s6 + $0x2b8] sm:$0xff]
    %v1747 = vld [vmem:[%s6 + $0x2c0] sm:$0xff]
    %v1748 = vld [vmem:[%s6 + $0x2c8] sm:$0xff]
    %v1749 = vld [vmem:[%s6 + $0x2d0] sm:$0xff]
    %v1750 = vld [vmem:[%s6 + $0x2d8] sm:$0xff]
    %v1751 = vld [vmem:[%s6 + $0x2e0] sm:$0xff]
    %v1752 = vld [vmem:[%s6 + $0x2e8] sm:$0xff]
    %v1753 = vld [vmem:[%s6 + $0x2f0] sm:$0xff]
    %v1754 = vld [vmem:[%s6 + $0x2f8] sm:$0xff]
    %v1755 = vld [vmem:[%s6 + $0x300] sm:$0xff]
    %v1756 = vld [vmem:[%s6 + $0x308] sm:$0xff]
    %v1757 = vld [vmem:[%s6 + $0x310] sm:$0xff]
    %v1758 = vld [vmem:[%s6 + $0x318] sm:$0xff]
    %v1759 = vld [vmem:[%s6 + $0x320] sm:$0xff]
    %v1760 = vld [vmem:[%s6 + $0x328] sm:$0xff]
    %v1761 = vld [vmem:[%s6 + $0x330] sm:$0xff]
    %v1762 = vld [vmem:[%s6 + $0x338] sm:$0xff]
    %v1763 = vld [vmem:[%s6 + $0x340] sm:$0xff]
    %v1764 = vld [vmem:[%s6 + $0x348] sm:$0xff]
    %v1765 = vld [vmem:[%s6 + $0x350] sm:$0xff]
    %v1766 = vld [vmem:[%s6 + $0x358] sm:$0xff]
    %v1768 = vsel %vm1172, %v1719, 0
    %v1771 = vsel %vm1172, %v1720, 0
    %v1774 = vsel %vm1172, %v1721, 0
    %v1777 = vsel %vm1172, %v1722, 0
    %v1780 = vsel %vm1172, %v1723, 0
    %v1783 = vsel %vm1172, %v1724, 0
    %v1786 = vsel %vm1172, %v1725, 0
    %v1789 = vsel %vm1172, %v1726, 0
    %v1792 = vsel %vm1172, %v1727, 0
    %v1795 = vsel %vm1172, %v1728, 0
    %v1798 = vsel %vm1172, %v1729, 0
    %v1801 = vsel %vm1172, %v1730, 0
    %1803 = vmatpush.msra.mxu0 0.0
    %1804 = vmatpush.msra.mxu0 0.0
    %1805 = vmatpush.msra.mxu0 0.0
    %1806 = vmatpush.msra.mxu0 0.0
    %1807 = vmatpush.msra.mxu0 %v1764
    %1808 = vmatpush.msra.mxu0 %v1761
    %1809 = vmatpush.msra.mxu0 %v1758
    %1810 = vmatpush.msra.mxu0 %v1755
    %1811 = vmatpush.msra.mxu0 %v1752
    %1812 = vmatpush.msra.mxu0 %v1749
    %1813 = vmatpush.msra.mxu0 %v1746
    %1814 = vmatpush.msra.mxu0 %v1743
    %1815 = vmatpush.msra.mxu0 %v1740
    %1816 = vmatpush.msra.mxu0 %v1737
    %1817 = vmatpush.msra.mxu0 %v1734
    %1818 = vmatpush.msra.mxu0 %v1731
    %1819 = vmatmul.f32.gmra.mxu0 %v1768
    %v1820 = vpop.f32.mrf.mxu0
    %v1821 = vadd.f32 0.0, %v1820
    %1822 = vmatmul.f32.gmra.mxu0 %v1771
    %v1823 = vpop.f32.mrf.mxu0
    %v1824 = vadd.f32 0.0, %v1823
    %1825 = vmatmul.f32.gmra.mxu0 %v1774
    %v1826 = vpop.f32.mrf.mxu0
    %v1827 = vadd.f32 0.0, %v1826
    %1828 = vmatmul.f32.gmra.mxu0 %v1777
    %v1829 = vpop.f32.mrf.mxu0
    %v1830 = vadd.f32 0.0, %v1829
    %1831 = vmatmul.f32.gmra.mxu0 %v1780
    %v1832 = vpop.f32.mrf.mxu0
    %v1833 = vadd.f32 0.0, %v1832
    %1834 = vmatmul.f32.gmra.mxu0 %v1783
    %v1835 = vpop.f32.mrf.mxu0
    %v1836 = vadd.f32 0.0, %v1835
    %1837 = vmatmul.f32.gmra.mxu0 %v1786
    %v1838 = vpop.f32.mrf.mxu0
    %v1839 = vadd.f32 0.0, %v1838
    %1840 = vmatmul.f32.gmra.mxu0 %v1789
    %v1841 = vpop.f32.mrf.mxu0
    %v1842 = vadd.f32 0.0, %v1841
    %1843 = vmatmul.f32.gmra.mxu0 %v1792
    %v1844 = vpop.f32.mrf.mxu0
    %v1845 = vadd.f32 0.0, %v1844
    %1846 = vmatmul.f32.gmra.mxu0 %v1795
    %v1847 = vpop.f32.mrf.mxu0
    %v1848 = vadd.f32 0.0, %v1847
    %1849 = vmatmul.f32.gmra.mxu0 %v1798
    %v1850 = vpop.f32.mrf.mxu0
    %v1851 = vadd.f32 0.0, %v1850
    %1852 = vmatmul.f32.gmra.mxu0 %v1801
    %v1853 = vpop.f32.mrf.mxu0
    %v1854 = vadd.f32 0.0, %v1853
    %1855 = vdwg.mxu0
    %1856 = vmatpush.msra.mxu0 0.0
    %1857 = vmatpush.msra.mxu0 0.0
    %1858 = vmatpush.msra.mxu0 0.0
    %1859 = vmatpush.msra.mxu0 0.0
    %1860 = vmatpush.msra.mxu0 %v1765
    %1861 = vmatpush.msra.mxu0 %v1762
    %1862 = vmatpush.msra.mxu0 %v1759
    %1863 = vmatpush.msra.mxu0 %v1756
    %1864 = vmatpush.msra.mxu0 %v1753
    %1865 = vmatpush.msra.mxu0 %v1750
    %1866 = vmatpush.msra.mxu0 %v1747
    %1867 = vmatpush.msra.mxu0 %v1744
    %1868 = vmatpush.msra.mxu0 %v1741
    %1869 = vmatpush.msra.mxu0 %v1738
    %1870 = vmatpush.msra.mxu0 %v1735
    %1871 = vmatpush.msra.mxu0 %v1732
    %1872 = vmatmul.f32.gmra.mxu0 %v1768
    %v1873 = vpop.f32.mrf.mxu0
    %v1874 = vadd.f32 0.0, %v1873
    %1875 = vmatmul.f32.gmra.mxu0 %v1771
    %v1876 = vpop.f32.mrf.mxu0
    %v1877 = vadd.f32 0.0, %v1876
    %1878 = vmatmul.f32.gmra.mxu0 %v1774
    %v1879 = vpop.f32.mrf.mxu0
    %v1880 = vadd.f32 0.0, %v1879
    %1881 = vmatmul.f32.gmra.mxu0 %v1777
    %v1882 = vpop.f32.mrf.mxu0
    %v1883 = vadd.f32 0.0, %v1882
    %1884 = vmatmul.f32.gmra.mxu0 %v1780
    %v1885 = vpop.f32.mrf.mxu0
    %v1886 = vadd.f32 0.0, %v1885
    %1887 = vmatmul.f32.gmra.mxu0 %v1783
    %v1888 = vpop.f32.mrf.mxu0
    %v1889 = vadd.f32 0.0, %v1888
    %1890 = vmatmul.f32.gmra.mxu0 %v1786
    %v1891 = vpop.f32.mrf.mxu0
    %v1892 = vadd.f32 0.0, %v1891
    %1893 = vmatmul.f32.gmra.mxu0 %v1789
    %v1894 = vpop.f32.mrf.mxu0
    %v1895 = vadd.f32 0.0, %v1894
    %1896 = vmatmul.f32.gmra.mxu0 %v1792
    %v1897 = vpop.f32.mrf.mxu0
    %v1898 = vadd.f32 0.0, %v1897
    %1899 = vmatmul.f32.gmra.mxu0 %v1795
    %v1900 = vpop.f32.mrf.mxu0
    %v1901 = vadd.f32 0.0, %v1900
    %1902 = vmatmul.f32.gmra.mxu0 %v1798
    %v1903 = vpop.f32.mrf.mxu0
    %v1904 = vadd.f32 0.0, %v1903
    %1905 = vmatmul.f32.gmra.mxu0 %v1801
    %v1906 = vpop.f32.mrf.mxu0
    %v1907 = vadd.f32 0.0, %v1906
    %1908 = vdwg.mxu0
    %1909 = vmatpush.msra.mxu0 0.0
    %1910 = vmatpush.msra.mxu0 0.0
    %1911 = vmatpush.msra.mxu0 0.0
    %1912 = vmatpush.msra.mxu0 0.0
    %1913 = vmatpush.msra.mxu0 %v1766
    %1914 = vmatpush.msra.mxu0 %v1763
    %1915 = vmatpush.msra.mxu0 %v1760
    %1916 = vmatpush.msra.mxu0 %v1757
    %1917 = vmatpush.msra.mxu0 %v1754
    %1918 = vmatpush.msra.mxu0 %v1751
    %1919 = vmatpush.msra.mxu0 %v1748
    %1920 = vmatpush.msra.mxu0 %v1745
    %1921 = vmatpush.msra.mxu0 %v1742
    %1922 = vmatpush.msra.mxu0 %v1739
    %1923 = vmatpush.msra.mxu0 %v1736
    %1924 = vmatpush.msra.mxu0 %v1733
    %1925 = vmatmul.f32.gmra.mxu0 %v1768
    %v1926 = vpop.f32.mrf.mxu0
    %v1927 = vadd.f32 0.0, %v1926
    %1928 = vmatmul.f32.gmra.mxu0 %v1771
    %v1929 = vpop.f32.mrf.mxu0
    %v1930 = vadd.f32 0.0, %v1929
    %1931 = vmatmul.f32.gmra.mxu0 %v1774
    %v1932 = vpop.f32.mrf.mxu0
    %v1933 = vadd.f32 0.0, %v1932
    %1934 = vmatmul.f32.gmra.mxu0 %v1777
    %v1935 = vpop.f32.mrf.mxu0
    %v1936 = vadd.f32 0.0, %v1935
    %1937 = vmatmul.f32.gmra.mxu0 %v1780
    %v1938 = vpop.f32.mrf.mxu0
    %v1939 = vadd.f32 0.0, %v1938
    %1940 = vmatmul.f32.gmra.mxu0 %v1783
    %v1941 = vpop.f32.mrf.mxu0
    %v1942 = vadd.f32 0.0, %v1941
    %1943 = vmatmul.f32.gmra.mxu0 %v1786
    %v1944 = vpop.f32.mrf.mxu0
    %v1945 = vadd.f32 0.0, %v1944
    %1946 = vmatmul.f32.gmra.mxu0 %v1789
    %v1947 = vpop.f32.mrf.mxu0
    %v1948 = vadd.f32 0.0, %v1947
    %1949 = vmatmul.f32.gmra.mxu0 %v1792
    %v1950 = vpop.f32.mrf.mxu0
    %v1951 = vadd.f32 0.0, %v1950
    %1952 = vmatmul.f32.gmra.mxu0 %v1795
    %v1953 = vpop.f32.mrf.mxu0
    %v1954 = vadd.f32 0.0, %v1953
    %1955 = vmatmul.f32.gmra.mxu0 %v1798
    %v1956 = vpop.f32.mrf.mxu0
    %v1957 = vadd.f32 0.0, %v1956
    %1958 = vmatmul.f32.gmra.mxu0 %v1801
    %v1959 = vpop.f32.mrf.mxu0
    %v1960 = vadd.f32 0.0, %v1959
    %1961 = vdwg.mxu0
    %v1962 = vadd.f32 %v1578, %v1821
    %v1963 = vadd.f32 %v1631, %v1874
    %v1964 = vadd.f32 %v1684, %v1927
    %v1965 = vadd.f32 %v1581, %v1824
    %v1966 = vadd.f32 %v1634, %v1877
    %v1967 = vadd.f32 %v1687, %v1930
    %v1968 = vadd.f32 %v1584, %v1827
    %v1969 = vadd.f32 %v1637, %v1880
    %v1970 = vadd.f32 %v1690, %v1933
    %v1971 = vadd.f32 %v1587, %v1830
    %v1972 = vadd.f32 %v1640, %v1883
    %v1973 = vadd.f32 %v1693, %v1936
    %v1974 = vadd.f32 %v1590, %v1833
    %v1975 = vadd.f32 %v1643, %v1886
    %v1976 = vadd.f32 %v1696, %v1939
    %v1977 = vadd.f32 %v1593, %v1836
    %v1978 = vadd.f32 %v1646, %v1889
    %v1979 = vadd.f32 %v1699, %v1942
    %v1980 = vadd.f32 %v1596, %v1839
    %v1981 = vadd.f32 %v1649, %v1892
    %v1982 = vadd.f32 %v1702, %v1945
    %v1983 = vadd.f32 %v1599, %v1842
    %v1984 = vadd.f32 %v1652, %v1895
    %v1985 = vadd.f32 %v1705, %v1948
    %v1986 = vadd.f32 %v1602, %v1845
    %v1987 = vadd.f32 %v1655, %v1898
    %v1988 = vadd.f32 %v1708, %v1951
    %v1989 = vadd.f32 %v1605, %v1848
    %v1990 = vadd.f32 %v1658, %v1901
    %v1991 = vadd.f32 %v1711, %v1954
    %v1992 = vadd.f32 %v1608, %v1851
    %v1993 = vadd.f32 %v1661, %v1904
    %v1994 = vadd.f32 %v1714, %v1957
    %v1995 = vadd.f32 %v1611, %v1854
    %v1996 = vadd.f32 %v1664, %v1907
    %v1997 = vadd.f32 %v1717, %v1960
    %v1998 = vld [vmem:[#allocation3 + $0x120] sm:$0xff]
    %v1999 = vld [vmem:[#allocation3 + $0x128] sm:$0xff]
    %v2000 = vld [vmem:[#allocation3 + $0x130] sm:$0xff]
    %v2001 = vld [vmem:[#allocation3 + $0x138] sm:$0xff]
    %v2002 = vld [vmem:[#allocation3 + $0x140] sm:$0xff]
    %v2003 = vld [vmem:[#allocation3 + $0x148] sm:$0xff]
    %v2004 = vld [vmem:[#allocation3 + $0x150] sm:$0xff]
    %v2005 = vld [vmem:[#allocation3 + $0x158] sm:$0xff]
    %v2006 = vld [vmem:[#allocation3 + $0x160] sm:$0xff]
    %v2007 = vld [vmem:[#allocation3 + $0x168] sm:$0xff]
    %v2008 = vld [vmem:[#allocation3 + $0x170] sm:$0xff]
    %v2009 = vld [vmem:[#allocation3 + $0x178] sm:$0xff]
    %v2010 = vld [vmem:[%s6 + $0x360] sm:$0xff]
    %v2011 = vld [vmem:[%s6 + $0x368] sm:$0xff]
    %v2012 = vld [vmem:[%s6 + $0x370] sm:$0xff]
    %v2013 = vld [vmem:[%s6 + $0x378] sm:$0xff]
    %v2014 = vld [vmem:[%s6 + $0x380] sm:$0xff]
    %v2015 = vld [vmem:[%s6 + $0x388] sm:$0xff]
    %v2016 = vld [vmem:[%s6 + $0x390] sm:$0xff]
    %v2017 = vld [vmem:[%s6 + $0x398] sm:$0xff]
    %v2018 = vld [vmem:[%s6 + $0x3a0] sm:$0xff]
    %v2019 = vld [vmem:[%s6 + $0x3a8] sm:$0xff]
    %v2020 = vld [vmem:[%s6 + $0x3b0] sm:$0xff]
    %v2021 = vld [vmem:[%s6 + $0x3b8] sm:$0xff]
    %v2022 = vld [vmem:[%s6 + $0x3c0] sm:$0xff]
    %v2023 = vld [vmem:[%s6 + $0x3c8] sm:$0xff]
    %v2024 = vld [vmem:[%s6 + $0x3d0] sm:$0xff]
    %v2025 = vld [vmem:[%s6 + $0x3d8] sm:$0xff]
    %v2026 = vld [vmem:[%s6 + $0x3e0] sm:$0xff]
    %v2027 = vld [vmem:[%s6 + $0x3e8] sm:$0xff]
    %v2028 = vld [vmem:[%s6 + $0x3f0] sm:$0xff]
    %v2029 = vld [vmem:[%s6 + $0x3f8] sm:$0xff]
    %v2030 = vld [vmem:[%s6 + $0x400] sm:$0xff]
    %v2031 = vld [vmem:[%s6 + $0x408] sm:$0xff]
    %v2032 = vld [vmem:[%s6 + $0x410] sm:$0xff]
    %v2033 = vld [vmem:[%s6 + $0x418] sm:$0xff]
    %v2034 = vld [vmem:[%s6 + $0x420] sm:$0xff]
    %v2035 = vld [vmem:[%s6 + $0x428] sm:$0xff]
    %v2036 = vld [vmem:[%s6 + $0x430] sm:$0xff]
    %v2037 = vld [vmem:[%s6 + $0x438] sm:$0xff]
    %v2038 = vld [vmem:[%s6 + $0x440] sm:$0xff]
    %v2039 = vld [vmem:[%s6 + $0x448] sm:$0xff]
    %v2040 = vld [vmem:[%s6 + $0x450] sm:$0xff]
    %v2041 = vld [vmem:[%s6 + $0x458] sm:$0xff]
    %v2042 = vld [vmem:[%s6 + $0x460] sm:$0xff]
    %v2043 = vld [vmem:[%s6 + $0x468] sm:$0xff]
    %v2044 = vld [vmem:[%s6 + $0x470] sm:$0xff]
    %v2045 = vld [vmem:[%s6 + $0x478] sm:$0xff]
    %v2047 = vsel %vm1172, %v1998, 0
    %v2050 = vsel %vm1172, %v1999, 0
    %v2053 = vsel %vm1172, %v2000, 0
    %v2056 = vsel %vm1172, %v2001, 0
    %v2059 = vsel %vm1172, %v2002, 0
    %v2062 = vsel %vm1172, %v2003, 0
    %v2065 = vsel %vm1172, %v2004, 0
    %v2068 = vsel %vm1172, %v2005, 0
    %v2071 = vsel %vm1172, %v2006, 0
    %v2074 = vsel %vm1172, %v2007, 0
    %v2077 = vsel %vm1172, %v2008, 0
    %v2080 = vsel %vm1172, %v2009, 0
    %2082 = vmatpush.msra.mxu0 0.0
    %2083 = vmatpush.msra.mxu0 0.0
    %2084 = vmatpush.msra.mxu0 0.0
    %2085 = vmatpush.msra.mxu0 0.0
    %2086 = vmatpush.msra.mxu0 %v2043
    %2087 = vmatpush.msra.mxu0 %v2040
    %2088 = vmatpush.msra.mxu0 %v2037
    %2089 = vmatpush.msra.mxu0 %v2034
    %2090 = vmatpush.msra.mxu0 %v2031
    %2091 = vmatpush.msra.mxu0 %v2028
    %2092 = vmatpush.msra.mxu0 %v2025
    %2093 = vmatpush.msra.mxu0 %v2022
    %2094 = vmatpush.msra.mxu0 %v2019
    %2095 = vmatpush.msra.mxu0 %v2016
    %2096 = vmatpush.msra.mxu0 %v2013
    %2097 = vmatpush.msra.mxu0 %v2010
    %2098 = vmatmul.f32.gmra.mxu0 %v2047
    %v2099 = vpop.f32.mrf.mxu0
    %v2100 = vadd.f32 0.0, %v2099
    %2101 = vmatmul.f32.gmra.mxu0 %v2050
    %v2102 = vpop.f32.mrf.mxu0
    %v2103 = vadd.f32 0.0, %v2102
    %2104 = vmatmul.f32.gmra.mxu0 %v2053
    %v2105 = vpop.f32.mrf.mxu0
    %v2106 = vadd.f32 0.0, %v2105
    %2107 = vmatmul.f32.gmra.mxu0 %v2056
    %v2108 = vpop.f32.mrf.mxu0
    %v2109 = vadd.f32 0.0, %v2108
    %2110 = vmatmul.f32.gmra.mxu0 %v2059
    %v2111 = vpop.f32.mrf.mxu0
    %v2112 = vadd.f32 0.0, %v2111
    %2113 = vmatmul.f32.gmra.mxu0 %v2062
    %v2114 = vpop.f32.mrf.mxu0
    %v2115 = vadd.f32 0.0, %v2114
    %2116 = vmatmul.f32.gmra.mxu0 %v2065
    %v2117 = vpop.f32.mrf.mxu0
    %v2118 = vadd.f32 0.0, %v2117
    %2119 = vmatmul.f32.gmra.mxu0 %v2068
    %v2120 = vpop.f32.mrf.mxu0
    %v2121 = vadd.f32 0.0, %v2120
    %2122 = vmatmul.f32.gmra.mxu0 %v2071
    %v2123 = vpop.f32.mrf.mxu0
    %v2124 = vadd.f32 0.0, %v2123
    %2125 = vmatmul.f32.gmra.mxu0 %v2074
    %v2126 = vpop.f32.mrf.mxu0
    %v2127 = vadd.f32 0.0, %v2126
    %2128 = vmatmul.f32.gmra.mxu0 %v2077
    %v2129 = vpop.f32.mrf.mxu0
    %v2130 = vadd.f32 0.0, %v2129
    %2131 = vmatmul.f32.gmra.mxu0 %v2080
    %v2132 = vpop.f32.mrf.mxu0
    %v2133 = vadd.f32 0.0, %v2132
    %2134 = vdwg.mxu0
    %2135 = vmatpush.msra.mxu0 0.0
    %2136 = vmatpush.msra.mxu0 0.0
    %2137 = vmatpush.msra.mxu0 0.0
    %2138 = vmatpush.msra.mxu0 0.0
    %2139 = vmatpush.msra.mxu0 %v2044
    %2140 = vmatpush.msra.mxu0 %v2041
    %2141 = vmatpush.msra.mxu0 %v2038
    %2142 = vmatpush.msra.mxu0 %v2035
    %2143 = vmatpush.msra.mxu0 %v2032
    %2144 = vmatpush.msra.mxu0 %v2029
    %2145 = vmatpush.msra.mxu0 %v2026
    %2146 = vmatpush.msra.mxu0 %v2023
    %2147 = vmatpush.msra.mxu0 %v2020
    %2148 = vmatpush.msra.mxu0 %v2017
    %2149 = vmatpush.msra.mxu0 %v2014
    %2150 = vmatpush.msra.mxu0 %v2011
    %2151 = vmatmul.f32.gmra.mxu0 %v2047
    %v2152 = vpop.f32.mrf.mxu0
    %v2153 = vadd.f32 0.0, %v2152
    %2154 = vmatmul.f32.gmra.mxu0 %v2050
    %v2155 = vpop.f32.mrf.mxu0
    %v2156 = vadd.f32 0.0, %v2155
    %2157 = vmatmul.f32.gmra.mxu0 %v2053
    %v2158 = vpop.f32.mrf.mxu0
    %v2159 = vadd.f32 0.0, %v2158
    %2160 = vmatmul.f32.gmra.mxu0 %v2056
    %v2161 = vpop.f32.mrf.mxu0
    %v2162 = vadd.f32 0.0, %v2161
    %2163 = vmatmul.f32.gmra.mxu0 %v2059
    %v2164 = vpop.f32.mrf.mxu0
    %v2165 = vadd.f32 0.0, %v2164
    %2166 = vmatmul.f32.gmra.mxu0 %v2062
    %v2167 = vpop.f32.mrf.mxu0
    %v2168 = vadd.f32 0.0, %v2167
    %2169 = vmatmul.f32.gmra.mxu0 %v2065
    %v2170 = vpop.f32.mrf.mxu0
    %v2171 = vadd.f32 0.0, %v2170
    %2172 = vmatmul.f32.gmra.mxu0 %v2068
    %v2173 = vpop.f32.mrf.mxu0
    %v2174 = vadd.f32 0.0, %v2173
    %2175 = vmatmul.f32.gmra.mxu0 %v2071
    %v2176 = vpop.f32.mrf.mxu0
    %v2177 = vadd.f32 0.0, %v2176
    %2178 = vmatmul.f32.gmra.mxu0 %v2074
    %v2179 = vpop.f32.mrf.mxu0
    %v2180 = vadd.f32 0.0, %v2179
    %2181 = vmatmul.f32.gmra.mxu0 %v2077
    %v2182 = vpop.f32.mrf.mxu0
    %v2183 = vadd.f32 0.0, %v2182
    %2184 = vmatmul.f32.gmra.mxu0 %v2080
    %v2185 = vpop.f32.mrf.mxu0
    %v2186 = vadd.f32 0.0, %v2185
    %2187 = vdwg.mxu0
    %2188 = vmatpush.msra.mxu0 0.0
    %2189 = vmatpush.msra.mxu0 0.0
    %2190 = vmatpush.msra.mxu0 0.0
    %2191 = vmatpush.msra.mxu0 0.0
    %2192 = vmatpush.msra.mxu0 %v2045
    %2193 = vmatpush.msra.mxu0 %v2042
    %2194 = vmatpush.msra.mxu0 %v2039
    %2195 = vmatpush.msra.mxu0 %v2036
    %2196 = vmatpush.msra.mxu0 %v2033
    %2197 = vmatpush.msra.mxu0 %v2030
    %2198 = vmatpush.msra.mxu0 %v2027
    %2199 = vmatpush.msra.mxu0 %v2024
    %2200 = vmatpush.msra.mxu0 %v2021
    %2201 = vmatpush.msra.mxu0 %v2018
    %2202 = vmatpush.msra.mxu0 %v2015
    %2203 = vmatpush.msra.mxu0 %v2012
    %2204 = vmatmul.f32.gmra.mxu0 %v2047
    %v2205 = vpop.f32.mrf.mxu0
    %v2206 = vadd.f32 0.0, %v2205
    %2207 = vmatmul.f32.gmra.mxu0 %v2050
    %v2208 = vpop.f32.mrf.mxu0
    %v2209 = vadd.f32 0.0, %v2208
    %2210 = vmatmul.f32.gmra.mxu0 %v2053
    %v2211 = vpop.f32.mrf.mxu0
    %v2212 = vadd.f32 0.0, %v2211
    %2213 = vmatmul.f32.gmra.mxu0 %v2056
    %v2214 = vpop.f32.mrf.mxu0
    %v2215 = vadd.f32 0.0, %v2214
    %2216 = vmatmul.f32.gmra.mxu0 %v2059
    %v2217 = vpop.f32.mrf.mxu0
    %v2218 = vadd.f32 0.0, %v2217
    %2219 = vmatmul.f32.gmra.mxu0 %v2062
    %v2220 = vpop.f32.mrf.mxu0
    %v2221 = vadd.f32 0.0, %v2220
    %2222 = vmatmul.f32.gmra.mxu0 %v2065
    %v2223 = vpop.f32.mrf.mxu0
    %v2224 = vadd.f32 0.0, %v2223
    %2225 = vmatmul.f32.gmra.mxu0 %v2068
    %v2226 = vpop.f32.mrf.mxu0
    %v2227 = vadd.f32 0.0, %v2226
    %2228 = vmatmul.f32.gmra.mxu0 %v2071
    %v2229 = vpop.f32.mrf.mxu0
    %v2230 = vadd.f32 0.0, %v2229
    %2231 = vmatmul.f32.gmra.mxu0 %v2074
    %v2232 = vpop.f32.mrf.mxu0
    %v2233 = vadd.f32 0.0, %v2232
    %2234 = vmatmul.f32.gmra.mxu0 %v2077
    %v2235 = vpop.f32.mrf.mxu0
    %v2236 = vadd.f32 0.0, %v2235
    %2237 = vmatmul.f32.gmra.mxu0 %v2080
    %v2238 = vpop.f32.mrf.mxu0
    %v2239 = vadd.f32 0.0, %v2238
    %2240 = vdwg.mxu0
    %v2241 = vadd.f32 %v1962, %v2100
    %v2242 = vadd.f32 %v1963, %v2153
    %v2243 = vadd.f32 %v1964, %v2206
    %v2244 = vadd.f32 %v1965, %v2103
    %v2245 = vadd.f32 %v1966, %v2156
    %v2246 = vadd.f32 %v1967, %v2209
    %v2247 = vadd.f32 %v1968, %v2106
    %v2248 = vadd.f32 %v1969, %v2159
    %v2249 = vadd.f32 %v1970, %v2212
    %v2250 = vadd.f32 %v1971, %v2109
    %v2251 = vadd.f32 %v1972, %v2162
    %v2252 = vadd.f32 %v1973, %v2215
    %v2253 = vadd.f32 %v1974, %v2112
    %v2254 = vadd.f32 %v1975, %v2165
    %v2255 = vadd.f32 %v1976, %v2218
    %v2256 = vadd.f32 %v1977, %v2115
    %v2257 = vadd.f32 %v1978, %v2168
    %v2258 = vadd.f32 %v1979, %v2221
    %v2259 = vadd.f32 %v1980, %v2118
    %v2260 = vadd.f32 %v1981, %v2171
    %v2261 = vadd.f32 %v1982, %v2224
    %v2262 = vadd.f32 %v1983, %v2121
    %v2263 = vadd.f32 %v1984, %v2174
    %v2264 = vadd.f32 %v1985, %v2227
    %v2265 = vadd.f32 %v1986, %v2124
    %v2266 = vadd.f32 %v1987, %v2177
    %v2267 = vadd.f32 %v1988, %v2230
    %v2268 = vadd.f32 %v1989, %v2127
    %v2269 = vadd.f32 %v1990, %v2180
    %v2270 = vadd.f32 %v1991, %v2233
    %v2271 = vadd.f32 %v1992, %v2130
    %v2272 = vadd.f32 %v1993, %v2183
    %v2273 = vadd.f32 %v1994, %v2236
    %v2274 = vadd.f32 %v1995, %v2133
    %v2275 = vadd.f32 %v1996, %v2186
    %v2276 = vadd.f32 %v1997, %v2239
    %v2277 = vld [vmem:[#allocation3 + $0x180] sm:$0xff]
    %v2278 = vld [vmem:[#allocation3 + $0x188] sm:$0xff]
    %v2279 = vld [vmem:[#allocation3 + $0x190] sm:$0xff]
    %v2280 = vld [vmem:[#allocation3 + $0x198] sm:$0xff]
    %v2281 = vld [vmem:[#allocation3 + $0x1a0] sm:$0xff]
    %v2282 = vld [vmem:[#allocation3 + $0x1a8] sm:$0xff]
    %v2283 = vld [vmem:[#allocation3 + $0x1b0] sm:$0xff]
    %v2284 = vld [vmem:[#allocation3 + $0x1b8] sm:$0xff]
    %v2285 = vld [vmem:[#allocation3 + $0x1c0] sm:$0xff]
    %v2286 = vld [vmem:[#allocation3 + $0x1c8] sm:$0xff]
    %v2287 = vld [vmem:[#allocation3 + $0x1d0] sm:$0xff]
    %v2288 = vld [vmem:[#allocation3 + $0x1d8] sm:$0xff]
    %v2289 = vld [vmem:[%s6 + $0x480] sm:$0xff]
    %v2290 = vld [vmem:[%s6 + $0x488] sm:$0xff]
    %v2291 = vld [vmem:[%s6 + $0x490] sm:$0xff]
    %v2292 = vld [vmem:[%s6 + $0x498] sm:$0xff]
    %v2293 = vld [vmem:[%s6 + $0x4a0] sm:$0xff]
    %v2294 = vld [vmem:[%s6 + $0x4a8] sm:$0xff]
    %v2295 = vld [vmem:[%s6 + $0x4b0] sm:$0xff]
    %v2296 = vld [vmem:[%s6 + $0x4b8] sm:$0xff]
    %v2297 = vld [vmem:[%s6 + $0x4c0] sm:$0xff]
    %v2298 = vld [vmem:[%s6 + $0x4c8] sm:$0xff]
    %v2299 = vld [vmem:[%s6 + $0x4d0] sm:$0xff]
    %v2300 = vld [vmem:[%s6 + $0x4d8] sm:$0xff]
    %v2301 = vld [vmem:[%s6 + $0x4e0] sm:$0xff]
    %v2302 = vld [vmem:[%s6 + $0x4e8] sm:$0xff]
    %v2303 = vld [vmem:[%s6 + $0x4f0] sm:$0xff]
    %v2304 = vld [vmem:[%s6 + $0x4f8] sm:$0xff]
    %v2305 = vld [vmem:[%s6 + $0x500] sm:$0xff]
    %v2306 = vld [vmem:[%s6 + $0x508] sm:$0xff]
    %v2307 = vld [vmem:[%s6 + $0x510] sm:$0xff]
    %v2308 = vld [vmem:[%s6 + $0x518] sm:$0xff]
    %v2309 = vld [vmem:[%s6 + $0x520] sm:$0xff]
    %v2310 = vld [vmem:[%s6 + $0x528] sm:$0xff]
    %v2311 = vld [vmem:[%s6 + $0x530] sm:$0xff]
    %v2312 = vld [vmem:[%s6 + $0x538] sm:$0xff]
    %v2313 = vld [vmem:[%s6 + $0x540] sm:$0xff]
    %v2314 = vld [vmem:[%s6 + $0x548] sm:$0xff]
    %v2315 = vld [vmem:[%s6 + $0x550] sm:$0xff]
    %v2316 = vld [vmem:[%s6 + $0x558] sm:$0xff]
    %v2317 = vld [vmem:[%s6 + $0x560] sm:$0xff]
    %v2318 = vld [vmem:[%s6 + $0x568] sm:$0xff]
    %v2319 = vld [vmem:[%s6 + $0x570] sm:$0xff]
    %v2320 = vld [vmem:[%s6 + $0x578] sm:$0xff]
    %v2321 = vld [vmem:[%s6 + $0x580] sm:$0xff]
    %v2322 = vld [vmem:[%s6 + $0x588] sm:$0xff]
    %v2323 = vld [vmem:[%s6 + $0x590] sm:$0xff]
    %v2324 = vld [vmem:[%s6 + $0x598] sm:$0xff]
    %v2326 = vsel %vm1172, %v2277, 0
    %v2329 = vsel %vm1172, %v2278, 0
    %v2332 = vsel %vm1172, %v2279, 0
    %v2335 = vsel %vm1172, %v2280, 0
    %v2338 = vsel %vm1172, %v2281, 0
    %v2341 = vsel %vm1172, %v2282, 0
    %v2344 = vsel %vm1172, %v2283, 0
    %v2347 = vsel %vm1172, %v2284, 0
    %v2350 = vsel %vm1172, %v2285, 0
    %v2353 = vsel %vm1172, %v2286, 0
    %v2356 = vsel %vm1172, %v2287, 0
    %v2359 = vsel %vm1172, %v2288, 0
    %2361 = vmatpush.msra.mxu0 0.0
    %2362 = vmatpush.msra.mxu0 0.0
    %2363 = vmatpush.msra.mxu0 0.0
    %2364 = vmatpush.msra.mxu0 0.0
    %2365 = vmatpush.msra.mxu0 %v2322
    %2366 = vmatpush.msra.mxu0 %v2319
    %2367 = vmatpush.msra.mxu0 %v2316
    %2368 = vmatpush.msra.mxu0 %v2313
    %2369 = vmatpush.msra.mxu0 %v2310
    %2370 = vmatpush.msra.mxu0 %v2307
    %2371 = vmatpush.msra.mxu0 %v2304
    %2372 = vmatpush.msra.mxu0 %v2301
    %2373 = vmatpush.msra.mxu0 %v2298
    %2374 = vmatpush.msra.mxu0 %v2295
    %2375 = vmatpush.msra.mxu0 %v2292
    %2376 = vmatpush.msra.mxu0 %v2289
    %2377 = vmatmul.f32.gmra.mxu0 %v2326
    %v2378 = vpop.f32.mrf.mxu0
    %v2379 = vadd.f32 0.0, %v2378
    %2380 = vmatmul.f32.gmra.mxu0 %v2329
    %v2381 = vpop.f32.mrf.mxu0
    %v2382 = vadd.f32 0.0, %v2381
    %2383 = vmatmul.f32.gmra.mxu0 %v2332
    %v2384 = vpop.f32.mrf.mxu0
    %v2385 = vadd.f32 0.0, %v2384
    %2386 = vmatmul.f32.gmra.mxu0 %v2335
    %v2387 = vpop.f32.mrf.mxu0
    %v2388 = vadd.f32 0.0, %v2387
    %2389 = vmatmul.f32.gmra.mxu0 %v2338
    %v2390 = vpop.f32.mrf.mxu0
    %v2391 = vadd.f32 0.0, %v2390
    %2392 = vmatmul.f32.gmra.mxu0 %v2341
    %v2393 = vpop.f32.mrf.mxu0
    %v2394 = vadd.f32 0.0, %v2393
    %2395 = vmatmul.f32.gmra.mxu0 %v2344
    %v2396 = vpop.f32.mrf.mxu0
    %v2397 = vadd.f32 0.0, %v2396
    %2398 = vmatmul.f32.gmra.mxu0 %v2347
    %v2399 = vpop.f32.mrf.mxu0
    %v2400 = vadd.f32 0.0, %v2399
    %2401 = vmatmul.f32.gmra.mxu0 %v2350
    %v2402 = vpop.f32.mrf.mxu0
    %v2403 = vadd.f32 0.0, %v2402
    %2404 = vmatmul.f32.gmra.mxu0 %v2353
    %v2405 = vpop.f32.mrf.mxu0
    %v2406 = vadd.f32 0.0, %v2405
    %2407 = vmatmul.f32.gmra.mxu0 %v2356
    %v2408 = vpop.f32.mrf.mxu0
    %v2409 = vadd.f32 0.0, %v2408
    %2410 = vmatmul.f32.gmra.mxu0 %v2359
    %v2411 = vpop.f32.mrf.mxu0
    %v2412 = vadd.f32 0.0, %v2411
    %2413 = vdwg.mxu0
    %2414 = vmatpush.msra.mxu0 0.0
    %2415 = vmatpush.msra.mxu0 0.0
    %2416 = vmatpush.msra.mxu0 0.0
    %2417 = vmatpush.msra.mxu0 0.0
    %2418 = vmatpush.msra.mxu0 %v2323
    %2419 = vmatpush.msra.mxu0 %v2320
    %2420 = vmatpush.msra.mxu0 %v2317
    %2421 = vmatpush.msra.mxu0 %v2314
    %2422 = vmatpush.msra.mxu0 %v2311
    %2423 = vmatpush.msra.mxu0 %v2308
    %2424 = vmatpush.msra.mxu0 %v2305
    %2425 = vmatpush.msra.mxu0 %v2302
    %2426 = vmatpush.msra.mxu0 %v2299
    %2427 = vmatpush.msra.mxu0 %v2296
    %2428 = vmatpush.msra.mxu0 %v2293
    %2429 = vmatpush.msra.mxu0 %v2290
    %2430 = vmatmul.f32.gmra.mxu0 %v2326
    %v2431 = vpop.f32.mrf.mxu0
    %v2432 = vadd.f32 0.0, %v2431
    %2433 = vmatmul.f32.gmra.mxu0 %v2329
    %v2434 = vpop.f32.mrf.mxu0
    %v2435 = vadd.f32 0.0, %v2434
    %2436 = vmatmul.f32.gmra.mxu0 %v2332
    %v2437 = vpop.f32.mrf.mxu0
    %v2438 = vadd.f32 0.0, %v2437
    %2439 = vmatmul.f32.gmra.mxu0 %v2335
    %v2440 = vpop.f32.mrf.mxu0
    %v2441 = vadd.f32 0.0, %v2440
    %2442 = vmatmul.f32.gmra.mxu0 %v2338
    %v2443 = vpop.f32.mrf.mxu0
    %v2444 = vadd.f32 0.0, %v2443
    %2445 = vmatmul.f32.gmra.mxu0 %v2341
    %v2446 = vpop.f32.mrf.mxu0
    %v2447 = vadd.f32 0.0, %v2446
    %2448 = vmatmul.f32.gmra.mxu0 %v2344
    %v2449 = vpop.f32.mrf.mxu0
    %v2450 = vadd.f32 0.0, %v2449
    %2451 = vmatmul.f32.gmra.mxu0 %v2347
    %v2452 = vpop.f32.mrf.mxu0
    %v2453 = vadd.f32 0.0, %v2452
    %2454 = vmatmul.f32.gmra.mxu0 %v2350
    %v2455 = vpop.f32.mrf.mxu0
    %v2456 = vadd.f32 0.0, %v2455
    %2457 = vmatmul.f32.gmra.mxu0 %v2353
    %v2458 = vpop.f32.mrf.mxu0
    %v2459 = vadd.f32 0.0, %v2458
    %2460 = vmatmul.f32.gmra.mxu0 %v2356
    %v2461 = vpop.f32.mrf.mxu0
    %v2462 = vadd.f32 0.0, %v2461
    %2463 = vmatmul.f32.gmra.mxu0 %v2359
    %v2464 = vpop.f32.mrf.mxu0
    %v2465 = vadd.f32 0.0, %v2464
    %2466 = vdwg.mxu0
    %2467 = vmatpush.msra.mxu0 0.0
    %2468 = vmatpush.msra.mxu0 0.0
    %2469 = vmatpush.msra.mxu0 0.0
    %2470 = vmatpush.msra.mxu0 0.0
    %2471 = vmatpush.msra.mxu0 %v2324
    %2472 = vmatpush.msra.mxu0 %v2321
    %2473 = vmatpush.msra.mxu0 %v2318
    %2474 = vmatpush.msra.mxu0 %v2315
    %2475 = vmatpush.msra.mxu0 %v2312
    %2476 = vmatpush.msra.mxu0 %v2309
    %2477 = vmatpush.msra.mxu0 %v2306
    %2478 = vmatpush.msra.mxu0 %v2303
    %2479 = vmatpush.msra.mxu0 %v2300
    %2480 = vmatpush.msra.mxu0 %v2297
    %2481 = vmatpush.msra.mxu0 %v2294
    %2482 = vmatpush.msra.mxu0 %v2291
    %2483 = vmatmul.f32.gmra.mxu0 %v2326
    %v2484 = vpop.f32.mrf.mxu0
    %v2485 = vadd.f32 0.0, %v2484
    %2486 = vmatmul.f32.gmra.mxu0 %v2329
    %v2487 = vpop.f32.mrf.mxu0
    %v2488 = vadd.f32 0.0, %v2487
    %2489 = vmatmul.f32.gmra.mxu0 %v2332
    %v2490 = vpop.f32.mrf.mxu0
    %v2491 = vadd.f32 0.0, %v2490
    %2492 = vmatmul.f32.gmra.mxu0 %v2335
    %v2493 = vpop.f32.mrf.mxu0
    %v2494 = vadd.f32 0.0, %v2493
    %2495 = vmatmul.f32.gmra.mxu0 %v2338
    %v2496 = vpop.f32.mrf.mxu0
    %v2497 = vadd.f32 0.0, %v2496
    %2498 = vmatmul.f32.gmra.mxu0 %v2341
    %v2499 = vpop.f32.mrf.mxu0
    %v2500 = vadd.f32 0.0, %v2499
    %2501 = vmatmul.f32.gmra.mxu0 %v2344
    %v2502 = vpop.f32.mrf.mxu0
    %v2503 = vadd.f32 0.0, %v2502
    %2504 = vmatmul.f32.gmra.mxu0 %v2347
    %v2505 = vpop.f32.mrf.mxu0
    %v2506 = vadd.f32 0.0, %v2505
    %2507 = vmatmul.f32.gmra.mxu0 %v2350
    %v2508 = vpop.f32.mrf.mxu0
    %v2509 = vadd.f32 0.0, %v2508
    %2510 = vmatmul.f32.gmra.mxu0 %v2353
    %v2511 = vpop.f32.mrf.mxu0
    %v2512 = vadd.f32 0.0, %v2511
    %2513 = vmatmul.f32.gmra.mxu0 %v2356
    %v2514 = vpop.f32.mrf.mxu0
    %v2515 = vadd.f32 0.0, %v2514
    %2516 = vmatmul.f32.gmra.mxu0 %v2359
    %v2517 = vpop.f32.mrf.mxu0
    %v2518 = vadd.f32 0.0, %v2517
    %2519 = vdwg.mxu0
    %v2520 = vadd.f32 %v2241, %v2379
    %v2521 = vadd.f32 %v2242, %v2432
    %v2522 = vadd.f32 %v2243, %v2485
    %v2523 = vadd.f32 %v2244, %v2382
    %v2524 = vadd.f32 %v2245, %v2435
    %v2525 = vadd.f32 %v2246, %v2488
    %v2526 = vadd.f32 %v2247, %v2385
    %v2527 = vadd.f32 %v2248, %v2438
    %v2528 = vadd.f32 %v2249, %v2491
    %v2529 = vadd.f32 %v2250, %v2388
    %v2530 = vadd.f32 %v2251, %v2441
    %v2531 = vadd.f32 %v2252, %v2494
    %v2532 = vadd.f32 %v2253, %v2391
    %v2533 = vadd.f32 %v2254, %v2444
    %v2534 = vadd.f32 %v2255, %v2497
    %v2535 = vadd.f32 %v2256, %v2394
    %v2536 = vadd.f32 %v2257, %v2447
    %v2537 = vadd.f32 %v2258, %v2500
    %v2538 = vadd.f32 %v2259, %v2397
    %v2539 = vadd.f32 %v2260, %v2450
    %v2540 = vadd.f32 %v2261, %v2503
    %v2541 = vadd.f32 %v2262, %v2400
    %v2542 = vadd.f32 %v2263, %v2453
    %v2543 = vadd.f32 %v2264, %v2506
    %v2544 = vadd.f32 %v2265, %v2403
    %v2545 = vadd.f32 %v2266, %v2456
    %v2546 = vadd.f32 %v2267, %v2509
    %v2547 = vadd.f32 %v2268, %v2406
    %v2548 = vadd.f32 %v2269, %v2459
    %v2549 = vadd.f32 %v2270, %v2512
    %v2550 = vadd.f32 %v2271, %v2409
    %v2551 = vadd.f32 %v2272, %v2462
    %v2552 = vadd.f32 %v2273, %v2515
    %v2553 = vadd.f32 %v2274, %v2412
    %v2554 = vadd.f32 %v2275, %v2465
    %v2555 = vadd.f32 %v2276, %v2518
    %2556 = vst [vmem:[%s9] sm:$0xff] %v2520
    %2557 = vst [vmem:[%s9 + $0x8] sm:$0xff] %v2521
    %2558 = vst [vmem:[%s9 + $0x10] sm:$0xff] %v2522
    %2559 = vst [vmem:[%s9 + $0x18] sm:$0xff] %v2523
    %2560 = vst [vmem:[%s9 + $0x20] sm:$0xff] %v2524
    %2561 = vst [vmem:[%s9 + $0x28] sm:$0xff] %v2525
    %2562 = vst [vmem:[%s9 + $0x30] sm:$0xff] %v2526
    %2563 = vst [vmem:[%s9 + $0x38] sm:$0xff] %v2527
    %2564 = vst [vmem:[%s9 + $0x40] sm:$0xff] %v2528
    %2565 = vst [vmem:[%s9 + $0x48] sm:$0xff] %v2529
    %2566 = vst [vmem:[%s9 + $0x50] sm:$0xff] %v2530
    %2567 = vst [vmem:[%s9 + $0x58] sm:$0xff] %v2531
    %2568 = vst [vmem:[%s9 + $0x60] sm:$0xff] %v2532
    %2569 = vst [vmem:[%s9 + $0x68] sm:$0xff] %v2533
    %2570 = vst [vmem:[%s9 + $0x70] sm:$0xff] %v2534
    %2571 = vst [vmem:[%s9 + $0x78] sm:$0xff] %v2535
    %2572 = vst [vmem:[%s9 + $0x80] sm:$0xff] %v2536
    %2573 = vst [vmem:[%s9 + $0x88] sm:$0xff] %v2537
    %2574 = vst [vmem:[%s9 + $0x90] sm:$0xff] %v2538
    %2575 = vst [vmem:[%s9 + $0x98] sm:$0xff] %v2539
    %2576 = vst [vmem:[%s9 + $0xa0] sm:$0xff] %v2540
    %2577 = vst [vmem:[%s9 + $0xa8] sm:$0xff] %v2541
    %2578 = vst [vmem:[%s9 + $0xb0] sm:$0xff] %v2542
    %2579 = vst [vmem:[%s9 + $0xb8] sm:$0xff] %v2543
    %2580 = vst [vmem:[%s9 + $0xc0] sm:$0xff] %v2544
    %2581 = vst [vmem:[%s9 + $0xc8] sm:$0xff] %v2545
    %2582 = vst [vmem:[%s9 + $0xd0] sm:$0xff] %v2546
    %2583 = vst [vmem:[%s9 + $0xd8] sm:$0xff] %v2547
    %2584 = vst [vmem:[%s9 + $0xe0] sm:$0xff] %v2548
    %2585 = vst [vmem:[%s9 + $0xe8] sm:$0xff] %v2549
    %2586 = vst [vmem:[%s9 + $0xf0] sm:$0xff] %v2550
    %2587 = vst [vmem:[%s9 + $0xf8] sm:$0xff] %v2551
    %2588 = vst [vmem:[%s9 + $0x100] sm:$0xff] %v2552
    %2589 = vst [vmem:[%s9 + $0x108] sm:$0xff] %v2553
    %2590 = vst [vmem:[%s9 + $0x110] sm:$0xff] %v2554
    %2591 = vst [vmem:[%s9 + $0x118] sm:$0xff] %v2555
    %vm2592 = vcmp.ne.f32.partialorder %v2520, 0.0
    %vm2593 = vcmp.ne.f32.partialorder %v2521, 0.0
    %vm2594 = vcmp.ne.f32.partialorder %v2522, 0.0
    %vm2595 = vcmp.ne.f32.partialorder %v2523, 0.0
    %vm2596 = vcmp.ne.f32.partialorder %v2524, 0.0
    %vm2597 = vcmp.ne.f32.partialorder %v2525, 0.0
    %vm2598 = vcmp.ne.f32.partialorder %v2526, 0.0
    %vm2599 = vcmp.ne.f32.partialorder %v2527, 0.0
    %vm2600 = vcmp.ne.f32.partialorder %v2528, 0.0
    %vm2601 = vcmp.ne.f32.partialorder %v2529, 0.0
    %vm2602 = vcmp.ne.f32.partialorder %v2530, 0.0
    %vm2603 = vcmp.ne.f32.partialorder %v2531, 0.0
    %vm2604 = vcmp.ne.f32.partialorder %v2532, 0.0
    %vm2605 = vcmp.ne.f32.partialorder %v2533, 0.0
    %vm2606 = vcmp.ne.f32.partialorder %v2534, 0.0
    %vm2607 = vcmp.ne.f32.partialorder %v2535, 0.0
    %vm2608 = vcmp.ne.f32.partialorder %v2536, 0.0
    %vm2609 = vcmp.ne.f32.partialorder %v2537, 0.0
    %vm2610 = vcmp.ne.f32.partialorder %v2538, 0.0
    %vm2611 = vcmp.ne.f32.partialorder %v2539, 0.0
    %vm2612 = vcmp.ne.f32.partialorder %v2540, 0.0
    %vm2613 = vcmp.ne.f32.partialorder %v2541, 0.0
    %vm2614 = vcmp.ne.f32.partialorder %v2542, 0.0
    %vm2615 = vcmp.ne.f32.partialorder %v2543, 0.0
    %vm2616 = vcmp.ne.f32.partialorder %v2544, 0.0
    %vm2617 = vcmp.ne.f32.partialorder %v2545, 0.0
    %vm2618 = vcmp.ne.f32.partialorder %v2546, 0.0
    %vm2619 = vcmp.ne.f32.partialorder %v2547, 0.0
    %vm2620 = vcmp.ne.f32.partialorder %v2548, 0.0
    %vm2621 = vcmp.ne.f32.partialorder %v2549, 0.0
    %vm2622 = vcmp.ne.f32.partialorder %v2550, 0.0
    %vm2623 = vcmp.ne.f32.partialorder %v2551, 0.0
    %vm2624 = vcmp.ne.f32.partialorder %v2552, 0.0
    %vm2625 = vcmp.ne.f32.partialorder %v2553, 0.0
    %vm2626 = vcmp.ne.f32.partialorder %v2554, 0.0
    %vm2627 = vcmp.ne.f32.partialorder %v2555, 0.0
    %v2628 = vld [vmem:[%s7] sm:$0xff]
    %v2629 = vld [vmem:[%s7 + $0x8] sm:$0xff]
    %v2630 = vld [vmem:[%s7 + $0x10] sm:$0xff]
    %v2631 = vld [vmem:[%s7 + $0x18] sm:$0xff]
    %v2632 = vld [vmem:[%s7 + $0x20] sm:$0xff]
    %v2633 = vld [vmem:[%s7 + $0x28] sm:$0xff]
    %v2634 = vld [vmem:[%s7 + $0x30] sm:$0xff]
    %v2635 = vld [vmem:[%s7 + $0x38] sm:$0xff]
    %v2636 = vld [vmem:[%s7 + $0x40] sm:$0xff]
    %v2637 = vld [vmem:[%s7 + $0x48] sm:$0xff]
    %v2638 = vld [vmem:[%s7 + $0x50] sm:$0xff]
    %v2639 = vld [vmem:[%s7 + $0x58] sm:$0xff]
    %v2640 = vld [vmem:[%s7 + $0x60] sm:$0xff]
    %v2641 = vld [vmem:[%s7 + $0x68] sm:$0xff]
    %v2642 = vld [vmem:[%s7 + $0x70] sm:$0xff]
    %v2643 = vld [vmem:[%s7 + $0x78] sm:$0xff]
    %v2644 = vld [vmem:[%s7 + $0x80] sm:$0xff]
    %v2645 = vld [vmem:[%s7 + $0x88] sm:$0xff]
    %v2646 = vld [vmem:[%s7 + $0x90] sm:$0xff]
    %v2647 = vld [vmem:[%s7 + $0x98] sm:$0xff]
    %v2648 = vld [vmem:[%s7 + $0xa0] sm:$0xff]
    %v2649 = vld [vmem:[%s7 + $0xa8] sm:$0xff]
    %v2650 = vld [vmem:[%s7 + $0xb0] sm:$0xff]
    %v2651 = vld [vmem:[%s7 + $0xb8] sm:$0xff]
    %v2652 = vld [vmem:[%s7 + $0xc0] sm:$0xff]
    %v2653 = vld [vmem:[%s7 + $0xc8] sm:$0xff]
    %v2654 = vld [vmem:[%s7 + $0xd0] sm:$0xff]
    %v2655 = vld [vmem:[%s7 + $0xd8] sm:$0xff]
    %v2656 = vld [vmem:[%s7 + $0xe0] sm:$0xff]
    %v2657 = vld [vmem:[%s7 + $0xe8] sm:$0xff]
    %v2658 = vld [vmem:[%s7 + $0xf0] sm:$0xff]
    %v2659 = vld [vmem:[%s7 + $0xf8] sm:$0xff]
    %v2660 = vld [vmem:[%s7 + $0x100] sm:$0xff]
    %v2661 = vld [vmem:[%s7 + $0x108] sm:$0xff]
    %v2662 = vld [vmem:[%s7 + $0x110] sm:$0xff]
    %v2663 = vld [vmem:[%s7 + $0x118] sm:$0xff]
    %v2664 = vsel %vm2592, %v2628, 1.0
    %v2665 = vsel %vm2593, %v2629, 1.0
    %v2666 = vsel %vm2594, %v2630, 1.0
    %v2667 = vsel %vm2595, %v2631, 1.0
    %v2668 = vsel %vm2596, %v2632, 1.0
    %v2669 = vsel %vm2597, %v2633, 1.0
    %v2670 = vsel %vm2598, %v2634, 1.0
    %v2671 = vsel %vm2599, %v2635, 1.0
    %v2672 = vsel %vm2600, %v2636, 1.0
    %v2673 = vsel %vm2601, %v2637, 1.0
    %v2674 = vsel %vm2602, %v2638, 1.0
    %v2675 = vsel %vm2603, %v2639, 1.0
    %v2676 = vsel %vm2604, %v2640, 1.0
    %v2677 = vsel %vm2605, %v2641, 1.0
    %v2678 = vsel %vm2606, %v2642, 1.0
    %v2679 = vsel %vm2607, %v2643, 1.0
    %v2680 = vsel %vm2608, %v2644, 1.0
    %v2681 = vsel %vm2609, %v2645, 1.0
    %v2682 = vsel %vm2610, %v2646, 1.0
    %v2683 = vsel %vm2611, %v2647, 1.0
    %v2684 = vsel %vm2612, %v2648, 1.0
    %v2685 = vsel %vm2613, %v2649, 1.0
    %v2686 = vsel %vm2614, %v2650, 1.0
    %v2687 = vsel %vm2615, %v2651, 1.0
    %v2688 = vsel %vm2616, %v2652, 1.0
    %v2689 = vsel %vm2617, %v2653, 1.0
    %v2690 = vsel %vm2618, %v2654, 1.0
    %v2691 = vsel %vm2619, %v2655, 1.0
    %v2692 = vsel %vm2620, %v2656, 1.0
    %v2693 = vsel %vm2621, %v2657, 1.0
    %v2694 = vsel %vm2622, %v2658, 1.0
    %v2695 = vsel %vm2623, %v2659, 1.0
    %v2696 = vsel %vm2624, %v2660, 1.0
    %v2697 = vsel %vm2625, %v2661, 1.0
    %v2698 = vsel %vm2626, %v2662, 1.0
    %v2699 = vsel %vm2627, %v2663, 1.0
    %2700 = vst [vmem:[%s8] sm:$0xff] %v2664
    %2701 = vst [vmem:[%s8 + $0x8] sm:$0xff] %v2665
    %2702 = vst [vmem:[%s8 + $0x10] sm:$0xff] %v2666
    %2703 = vst [vmem:[%s8 + $0x18] sm:$0xff] %v2667
    %2704 = vst [vmem:[%s8 + $0x20] sm:$0xff] %v2668
    %2705 = vst [vmem:[%s8 + $0x28] sm:$0xff] %v2669
    %2706 = vst [vmem:[%s8 + $0x30] sm:$0xff] %v2670
    %2707 = vst [vmem:[%s8 + $0x38] sm:$0xff] %v2671
    %2708 = vst [vmem:[%s8 + $0x40] sm:$0xff] %v2672
    %2709 = vst [vmem:[%s8 + $0x48] sm:$0xff] %v2673
    %2710 = vst [vmem:[%s8 + $0x50] sm:$0xff] %v2674
    %2711 = vst [vmem:[%s8 + $0x58] sm:$0xff] %v2675
    %2712 = vst [vmem:[%s8 + $0x60] sm:$0xff] %v2676
    %2713 = vst [vmem:[%s8 + $0x68] sm:$0xff] %v2677
    %2714 = vst [vmem:[%s8 + $0x70] sm:$0xff] %v2678
    %2715 = vst [vmem:[%s8 + $0x78] sm:$0xff] %v2679
    %2716 = vst [vmem:[%s8 + $0x80] sm:$0xff] %v2680
    %2717 = vst [vmem:[%s8 + $0x88] sm:$0xff] %v2681
    %2718 = vst [vmem:[%s8 + $0x90] sm:$0xff] %v2682
    %2719 = vst [vmem:[%s8 + $0x98] sm:$0xff] %v2683
    %2720 = vst [vmem:[%s8 + $0xa0] sm:$0xff] %v2684
    %2721 = vst [vmem:[%s8 + $0xa8] sm:$0xff] %v2685
    %2722 = vst [vmem:[%s8 + $0xb0] sm:$0xff] %v2686
    %2723 = vst [vmem:[%s8 + $0xb8] sm:$0xff] %v2687
    %2724 = vst [vmem:[%s8 + $0xc0] sm:$0xff] %v2688
    %2725 = vst [vmem:[%s8 + $0xc8] sm:$0xff] %v2689
    %2726 = vst [vmem:[%s8 + $0xd0] sm:$0xff] %v2690
    %2727 = vst [vmem:[%s8 + $0xd8] sm:$0xff] %v2691
    %2728 = vst [vmem:[%s8 + $0xe0] sm:$0xff] %v2692
    %2729 = vst [vmem:[%s8 + $0xe8] sm:$0xff] %v2693
    %2730 = vst [vmem:[%s8 + $0xf0] sm:$0xff] %v2694
    %2731 = vst [vmem:[%s8 + $0xf8] sm:$0xff] %v2695
    %2732 = vst [vmem:[%s8 + $0x100] sm:$0xff] %v2696
    %2733 = vst [vmem:[%s8 + $0x108] sm:$0xff] %v2697
    %2734 = vst [vmem:[%s8 + $0x110] sm:$0xff] %v2698
    %2735 = vst [vmem:[%s8 + $0x118] sm:$0xff] %v2699
    %v2736 = vsel %vm2592, 1, 0
    %v2737 = vsel %vm2593, 1, 0
    %v2738 = vsel %vm2594, 1, 0
    %v2739 = vsel %vm2595, 1, 0
    %v2740 = vsel %vm2596, 1, 0
    %v2741 = vsel %vm2597, 1, 0
    %v2742 = vsel %vm2598, 1, 0
    %v2743 = vsel %vm2599, 1, 0
    %v2744 = vsel %vm2600, 1, 0
    %v2745 = vsel %vm2601, 1, 0
    %v2746 = vsel %vm2602, 1, 0
    %v2747 = vsel %vm2603, 1, 0
    %v2748 = vsel %vm2604, 1, 0
    %v2749 = vsel %vm2605, 1, 0
    %v2750 = vsel %vm2606, 1, 0
    %v2751 = vsel %vm2607, 1, 0
    %v2752 = vsel %vm2608, 1, 0
    %v2753 = vsel %vm2609, 1, 0
    %v2754 = vsel %vm2610, 1, 0
    %v2755 = vsel %vm2611, 1, 0
    %v2756 = vsel %vm2612, 1, 0
    %v2757 = vsel %vm2613, 1, 0
    %v2758 = vsel %vm2614, 1, 0
    %v2759 = vsel %vm2615, 1, 0
    %v2760 = vsel %vm2616, 1, 0
    %v2761 = vsel %vm2617, 1, 0
    %v2762 = vsel %vm2618, 1, 0
    %v2763 = vsel %vm2619, 1, 0
    %v2764 = vsel %vm2620, 1, 0
    %v2765 = vsel %vm2621, 1, 0
    %v2766 = vsel %vm2622, 1, 0
    %v2767 = vsel %vm2623, 1, 0
    %v2768 = vsel %vm2624, 1, 0
    %v2769 = vsel %vm2625, 1, 0
    %v2770 = vsel %vm2626, 1, 0
    %v2771 = vsel %vm2627, 1, 0
    %v2772 = vcvt.s32.f32 %v2736
    %v2773 = vcvt.s32.f32 %v2737
    %v2774 = vcvt.s32.f32 %v2738
    %v2775 = vcvt.s32.f32 %v2739
    %v2776 = vcvt.s32.f32 %v2740
    %v2777 = vcvt.s32.f32 %v2741
    %v2778 = vcvt.s32.f32 %v2742
    %v2779 = vcvt.s32.f32 %v2743
    %v2780 = vcvt.s32.f32 %v2744
    %v2781 = vcvt.s32.f32 %v2745
    %v2782 = vcvt.s32.f32 %v2746
    %v2783 = vcvt.s32.f32 %v2747
    %v2784 = vcvt.s32.f32 %v2748
    %v2785 = vcvt.s32.f32 %v2749
    %v2786 = vcvt.s32.f32 %v2750
    %v2787 = vcvt.s32.f32 %v2751
    %v2788 = vcvt.s32.f32 %v2752
    %v2789 = vcvt.s32.f32 %v2753
    %v2790 = vcvt.s32.f32 %v2754
    %v2791 = vcvt.s32.f32 %v2755
    %v2792 = vcvt.s32.f32 %v2756
    %v2793 = vcvt.s32.f32 %v2757
    %v2794 = vcvt.s32.f32 %v2758
    %v2795 = vcvt.s32.f32 %v2759
    %v2796 = vcvt.s32.f32 %v2760
    %v2797 = vcvt.s32.f32 %v2761
    %v2798 = vcvt.s32.f32 %v2762
    %v2799 = vcvt.s32.f32 %v2763
    %v2800 = vcvt.s32.f32 %v2764
    %v2801 = vcvt.s32.f32 %v2765
    %v2802 = vcvt.s32.f32 %v2766
    %v2803 = vcvt.s32.f32 %v2767
    %v2804 = vcvt.s32.f32 %v2768
    %v2805 = vcvt.s32.f32 %v2769
    %v2806 = vcvt.s32.f32 %v2770
    %v2807 = vcvt.s32.f32 %v2771
    %v2808 = vadd.f32 %v2772, %v2773
    %v2809 = vadd.f32 %v2808, %v2774
    %v2810 = vadd.f32 %v2809, %v2775
    %v2811 = vadd.f32 %v2810, %v2776
    %v2812 = vadd.f32 %v2811, %v2777
    %v2813 = vadd.f32 %v2812, %v2778
    %v2814 = vadd.f32 %v2813, %v2779
    %v2815 = vadd.f32 %v2814, %v2780
    %v2816 = vadd.f32 %v2815, %v2781
    %v2817 = vadd.f32 %v2816, %v2782
    %v2818 = vadd.f32 %v2817, %v2783
    %v2819 = vadd.f32 %v2818, %v2784
    %v2820 = vadd.f32 %v2819, %v2785
    %v2821 = vadd.f32 %v2820, %v2786
    %v2822 = vadd.f32 %v2821, %v2787
    %v2823 = vadd.f32 %v2822, %v2788
    %v2824 = vadd.f32 %v2823, %v2789
    %v2825 = vadd.f32 %v2824, %v2790
    %v2826 = vadd.f32 %v2825, %v2791
    %v2827 = vadd.f32 %v2826, %v2792
    %v2828 = vadd.f32 %v2827, %v2793
    %v2829 = vadd.f32 %v2828, %v2794
    %v2830 = vadd.f32 %v2829, %v2795
    %v2831 = vadd.f32 %v2830, %v2796
    %v2832 = vadd.f32 %v2831, %v2797
    %v2833 = vadd.f32 %v2832, %v2798
    %v2834 = vadd.f32 %v2833, %v2799
    %v2835 = vadd.f32 %v2834, %v2800
    %v2836 = vadd.f32 %v2835, %v2801
    %v2837 = vadd.f32 %v2836, %v2802
    %v2838 = vadd.f32 %v2837, %v2803
    %v2839 = vadd.f32 %v2838, %v2804
    %v2840 = vadd.f32 %v2839, %v2805
    %v2841 = vadd.f32 %v2840, %v2806
    %v2842 = vadd.f32 %v2841, %v2807
    %2843 = vadd.xlane.f32.xlu0 %v2842
    %v2844 = vpop.xlane.xlu0 %2843
    %v2845 = vrot.slane %v2844, 4
    %v2846 = vadd.f32 %v2844, %v2845
    %v2847 = vrot.slane %v2846, 2
    %v2848 = vadd.f32 %v2846, %v2847
    %v2849 = vrot.slane %v2848, 1
    %v2850 = vadd.f32 %v2848, %v2849
    %s2851 = vtos %v2850
    %s2852 = scalar_lea.smem [#allocation4], 0
    %2853 = sst [smem:[%s2852]] %s2851
    // Predicated region
    $region34: #{_attn_vis_impl.1} parent=1 // pred_check
      _
    $region35: #{_attn_vis_impl.1} parent=1 // pred_check_branch
      %2855 = sbr.rel (0) target = $region37
    $region36: #{_attn_vis_impl.1} parent=1 // pred_region
      _
    $region37: #{_attn_vis_impl.1} parent=1 // pred_fallthru
      _
    // Predicated region
    $region38: #{_attn_vis_impl.1} parent=1 // pred_check
      _
    $region39: #{_attn_vis_impl.1} parent=1 // pred_check_branch
      %2857 = sbr.rel (0) target = $region41
    $region40: #{_attn_vis_impl.1} parent=1 // pred_region
      _
    $region41: #{_attn_vis_impl.1} parent=1 // pred_fallthru
      _
    // Predicated region
    $region42: #{_attn_vis_impl.1} parent=1 // pred_check
      _
    $region43: #{_attn_vis_impl.1} parent=1 // pred_check_branch
      %2859 = sbr.rel (0) target = $region45
    $region44: #{_attn_vis_impl.1} parent=1 // pred_region
      %2861 = vsyncadd [#allocation5], 0
      %s2863 = sshll.u32 %s10, 4
      %s2864 = int_to_ptr.hbm [resolvable:$true] %s2863
      %2866 = dma.smem_to_hbm [#allocation4], 16, %s2864, [#allocation5]
    $region45: #{_attn_vis_impl.1} parent=1 // pred_fallthru
      _
    // Predicated region
    $region46: #{_attn_vis_impl.1} parent=1 // pred_check
      _
    $region47: #{_attn_vis_impl.1} parent=1 // pred_check_branch
      %2868 = sbr.rel (0) target = $region49
    $region48: #{_attn_vis_impl.1} parent=1 // pred_region
      _
    $region49: #{_attn_vis_impl.1} parent=1 // pred_fallthru
      _
    // Predicated region
    $region50: #{_attn_vis_impl.1} parent=1 // pred_check
      _
    $region51: #{_attn_vis_impl.1} parent=1 // pred_check_branch
      %2870 = sbr.rel (0) target = $region53
    $region52: #{_attn_vis_impl.1} parent=1 // pred_region
      _
    $region53: #{_attn_vis_impl.1} parent=1 // pred_fallthru
      _
    // Predicated region
    $region54: #{_attn_vis_impl.1} parent=1 // pred_check
      _
    $region55: #{_attn_vis_impl.1} parent=1 // pred_check_branch
      %2872 = sbr.rel (0) target = $region57
    $region56: #{_attn_vis_impl.1} parent=1 // pred_region
      %2874 = dma.done [#allocation5], 16
    $region57: #{_attn_vis_impl.1} parent=1 // pred_fallthru
      _
    %2875 = sfence
    %2876 = vsyncpa [#allocation5], 1

</llo_original>
